<compile_context>
chip_gen: v5e
topology: v5e:2x2
jax: 0.10.0
libtpu: 0.0.40
codegen_flags: <defaults>
</compile_context>

<pallas_src>
import functools
import math

import jax
import jax.numpy as jnp
from jax.experimental import pallas as pl
from jax.experimental.pallas import tpu as pltpu

# ---------------- config (small, consistent with the module) ----------------
NUM_STATES = 5
NUM_ACTIONS = 4
SEQ_LEN_CTX = 8            # T context transitions -> model sequence length T+1
HIDDEN = 32
NUM_LAYERS = 2
NUM_HEADS = 4
STATE_EMB = 16             # state_rnn_embedding
LN_EPS = 1e-5


def _round_up(x, m):
    return (x + m - 1) // m * m


# ---------------------------- in-kernel helpers ------------------------------
def _layernorm(x, w, b):
    mu = jnp.mean(x, axis=-1, keepdims=True)
    xc = x - mu
    var = jnp.mean(xc * xc, axis=-1, keepdims=True)
    return xc * jax.lax.rsqrt(var + LN_EPS) * w + b


def _gelu(x):
    # TODO(synk): PyTorch nn.GELU default is exact erf-based; tanh approximation used here.
    c = math.sqrt(2.0 / math.pi)
    return 0.5 * x * (1.0 + jnp.tanh(c * (x + 0.044715 * x * x * x)))


# ------------------------- fused DPT forward kernel --------------------------
def _dpt_fused_kernel(x_ref, w_in_ref, b_in_ref, vecs_ref, wqkv_ref, bqkv_ref,
                      wo_ref, w1_ref, b1_ref, w2_ref, wh_ref, bh_ref,
                      o_ref, *, num_layers, num_heads, seq_len, pad_len):
    L, Lp = seq_len, pad_len
    M = x_ref.shape[0]                       # rows in this block = Bb * Lp
    Bb = M // Lp
    H = w_in_ref.shape[1]
    hd = H // num_heads
    f32 = jnp.float32
    bf16 = jnp.bfloat16

    # ---- fused input embedding: embedd + one-hot + embed_transition folded ----
    # (single matmul on the packed (M, 16) input slab; folding done in wrapper)
    h = jnp.dot(x_ref[...].astype(bf16), w_in_ref[...],
                preferred_element_type=f32) + b_in_ref[...]
    # TODO(synk): embedding / attention / residual dropouts are eval-mode identities.

    # causal mask built once at (1, Lp, Lp); broadcast against every head's scores.
    q_pos = jax.lax.broadcasted_iota(jnp.int32, (1, Lp, Lp), 1)
    k_pos = jax.lax.broadcasted_iota(jnp.int32, (1, Lp, Lp), 2)
    causal = q_pos >= k_pos

    for l in range(num_layers):
        vec_l = vecs_ref[l]                              # (6, H) packed small params
        ln1_w, ln1_b, bo = vec_l[0:1], vec_l[1:2], vec_l[2:3]
        ln2_w, ln2_b, b2 = vec_l[3:4], vec_l[4:5], vec_l[5:6]

        # ---- pre-norm causal multi-head self-attention ----
        xn = _layernorm(h, ln1_w, ln1_b)
        # Q columns of wqkv/bqkv were pre-scaled by 1/sqrt(hd) in the wrapper.
        qkv = jnp.dot(xn.astype(bf16), wqkv_ref[l],
                      preferred_element_type=f32) + bqkv_ref[l]     # (M, 3H) f32
        qkv3 = qkv.reshape(Bb, Lp, 3 * H)
        q = qkv3[..., :H].astype(bf16)                   # (Bb, Lp, H)
        k = qkv3[..., H:2 * H].astype(bf16)
        v = qkv3[..., 2 * H:].astype(bf16)

        z_heads = []
        for hh in range(num_heads):                      # fixed, batch-independent trip count
            sl = slice(hh * hd, (hh + 1) * hd)
            s = jnp.einsum('bqd,bkd->bqk', q[..., sl], k[..., sl],
                           preferred_element_type=f32)   # (Bb, Lp, Lp)
            s = jnp.where(causal, s, -1e30)
            m = jnp.max(s, axis=-1, keepdims=True)
            e = jnp.exp(s - m)
            p = e * pl.reciprocal(jnp.sum(e, axis=-1, keepdims=True), approx=True)
            z_heads.append(jnp.einsum('bqk,bkd->bqd', p.astype(bf16), v[..., sl],
                                      preferred_element_type=f32))  # (Bb, Lp, hd)
        attn = jnp.concatenate(z_heads, axis=-1).reshape(M, H)       # concat heads
        attn = jnp.dot(attn.astype(bf16), wo_ref[l],
                       preferred_element_type=f32) + bo
        h = h + attn

        # ---- pre-norm GELU MLP ----
        xn2 = _layernorm(h, ln2_w, ln2_b)
        mlp = jnp.dot(xn2.astype(bf16), w1_ref[l],
                      preferred_element_type=f32) + b1_ref[l]
        mlp = _gelu(mlp)
        mlp = jnp.dot(mlp.astype(bf16), w2_ref[l],
                      preferred_element_type=f32) + b2
        h = h + mlp

    # ---- last real token per batch element, then the action head ----
    h_last = h.reshape(Bb, Lp, H)[:, L - 1, :]                       # (Bb, H)
    logits = jnp.dot(h_last.astype(bf16), wh_ref[...],
                     preferred_element_type=f32) + bh_ref[...]
    o_ref[0] = logits.astype(o_ref.dtype)


def dpt_trunk(x_slab, weights, *, seq_len, pad_len, b_tile, n_blocks,
              num_layers, num_heads):
    M = b_tile * pad_len
    Fin = x_slab.shape[1]
    A = weights[9].shape[1]                  # w_head (H, A)

    def const_spec(shape):
        nd = len(shape)
        return pl.BlockSpec(shape, lambda i, _nd=nd: (0,) * _nd)

    in_specs = [pl.BlockSpec((M, Fin), lambda i: (i, 0))]
    in_specs += [const_spec(w.shape) for w in weights]

    kernel = functools.partial(_dpt_fused_kernel, num_layers=num_layers,
                               num_heads=num_heads, seq_len=seq_len,
                               pad_len=pad_len)

    out = pl.pallas_call(
        kernel,
        out_shape=jax.ShapeDtypeStruct((n_blocks, b_tile, A), jnp.float32),
        grid=(n_blocks,),
        in_specs=in_specs,
        out_specs=pl.BlockSpec((1, b_tile, A), lambda i: (i, 0, 0)),
        compiler_params=pltpu.CompilerParams(
            dimension_semantics=("parallel",)),          # batch tiles across v7x TCs
    )(x_slab, *weights)
    return out.reshape(n_blocks * b_tile, A)


# ------------------------------- parameters ----------------------------------
def init_params(key):
    # Matches _init_weights: Linear weights ~ N(0, 0.02), biases 0, LN w=1 b=0.
    def nrm(k, shape):
        return 0.02 * jax.random.normal(k, shape, jnp.float32)

    ks = jax.random.split(key, 8)
    E, H, A, S, Nl = STATE_EMB, HIDDEN, NUM_ACTIONS, NUM_STATES, NUM_LAYERS
    Din = 2 * E + A + 1   # full_sequence=True
    return {
        "w_embedd": nrm(ks[0], (S, E)), "b_embedd": jnp.zeros((1, E), jnp.float32),
        "w_emb": nrm(ks[1], (Din, H)), "b_emb": jnp.zeros((1, H), jnp.float32),
        "ln1_w": jnp.ones((Nl, H), jnp.float32), "ln1_b": jnp.zeros((Nl, H), jnp.float32),
        "wqkv": nrm(ks[2], (Nl, H, 3 * H)), "bqkv": jnp.zeros((Nl, 3 * H), jnp.float32),
        "wo": nrm(ks[3], (Nl, H, H)), "bo": jnp.zeros((Nl, H), jnp.float32),
        "ln2_w": jnp.ones((Nl, H), jnp.float32), "ln2_b": jnp.zeros((Nl, H), jnp.float32),
        "w1": nrm(ks[4], (Nl, H, 4 * H)), "b1": jnp.zeros((Nl, 4 * H), jnp.float32),
        "w2": nrm(ks[5], (Nl, 4 * H, H)), "b2": jnp.zeros((Nl, H), jnp.float32),
        "w_head": nrm(ks[6], (H, A)), "b_head": jnp.zeros((1, A), jnp.float32),
    }


# ------------------------------ forward (glue) --------------------------------
def dpt_forward(params, query_state, context_states, context_actions,
                context_next_states, context_rewards):
    if query_state.ndim < 3:
        query_state = query_state[:, None, :]                    # (B, 1, S)
    B, T, S = context_states.shape
    L = T + 1
    Lp = _round_up(L, 8)                        # sublane-aligned padded sequence
    E, H, A = STATE_EMB, HIDDEN, NUM_ACTIONS
    Nl = params["wqkv"].shape[0]

    # batch tiling: keep per-grid-step working set small and both v7x TCs busy
    b_tile = min(8, max(1, (B + 1) // 2))
    B_pad = _round_up(B, b_tile)
    n_blocks = B_pad // b_tile

    f32, bf16 = jnp.float32, jnp.bfloat16

    # ---- pack the five narrow sequence inputs into ONE (M, 16) slab ----
    # columns: [state(S) | next_state(S) | action_onehot(A) | reward(1) | nmask(1)]
    st_seq = jnp.concatenate([query_state.astype(f32),
                              context_states.astype(f32)], axis=1)           # (B,L,S)
    nx_seq = jnp.concatenate([jnp.zeros((B, 1, S), f32),
                              context_next_states.astype(f32)], axis=1)      # (B,L,S)
    onehot = jax.nn.one_hot(context_actions, A, dtype=f32)
    act_seq = jnp.concatenate([jnp.zeros((B, 1, A), f32), onehot], axis=1)   # (B,L,A)
    rew_seq = jnp.concatenate([jnp.zeros((B, 1, 1), f32),
                               context_rewards.astype(f32)[..., None]], axis=1)
    nmask = jnp.broadcast_to((jnp.arange(L) > 0).astype(f32)[None, :, None], (B, L, 1))

    slab = jnp.concatenate([st_seq, nx_seq, act_seq, rew_seq, nmask], axis=-1)
    slab = jnp.pad(slab, ((0, B_pad - B), (0, Lp - L), (0, 0)))
    x_slab = slab.reshape(B_pad * Lp, 2 * S + A + 2)

    # ---- fold embedd + embed_transition into a single input matrix (exact) ----
    We, be0 = params["w_embedd"], params["b_embedd"]           # (S,E), (1,E)
    w_emb, b_emb = params["w_emb"], params["b_emb"]            # (2E+A+1,H), (1,H)
    Wes = w_emb[:E]
    Wea = w_emb[E:E + A]
    Wen = w_emb[E + A:2 * E + A]
    Wer = w_emb[2 * E + A:]
    w_in = jnp.concatenate([We @ Wes, We @ Wen, Wea, Wer, be0 @ Wen], axis=0)  # (2S+A+2,H)
    b_in = be0 @ Wes + b_emb                                                    # (1,H)

    # fold the 1/sqrt(head_dim) attention scale into the Q projection
    hd = H // NUM_HEADS
    scale = 1.0 / math.sqrt(hd)
    wqkv = params["wqkv"].at[:, :, :H].mul(scale)
    bqkv = params["bqkv"].at[:, :H].mul(scale).reshape(Nl, 1, 3 * H)
    b1 = params["b1"].reshape(Nl, 1, 4 * H)

    # pack the small per-layer (H,) vectors into one slab (stays f32)
    vecs = jnp.stack([params["ln1_w"], params["ln1_b"], params["bo"],
                      params["ln2_w"], params["ln2_b"], params["b2"]], axis=1)  # (Nl,6,H)

    # matmul weights in bf16 (MXU-native); biases / LN params stay f32
    weights = [w_in.astype(bf16), b_in,
               vecs, wqkv.astype(bf16), bqkv,
               params["wo"].astype(bf16),
               params["w1"].astype(bf16), b1,
               params["w2"].astype(bf16),
               params["w_head"].astype(bf16), params["b_head"]]

    out = dpt_trunk(x_slab, weights, seq_len=L, pad_len=Lp, b_tile=b_tile,
                    n_blocks=n_blocks, num_layers=Nl, num_heads=NUM_HEADS)
    return out[:B]                                              # (B, A)


# ----------------------------------- main -------------------------------------
if __name__ == "__main__":
    key = jax.random.PRNGKey(0)
    kq, ks, ka, kn, kr, kp = jax.random.split(key, 6)
    B, T = 2, SEQ_LEN_CTX

    query_state = jax.random.normal(kq, (B, NUM_STATES), jnp.float32)
    context_states = jax.random.normal(ks, (B, T, NUM_STATES), jnp.float32)
    context_actions = jax.random.randint(ka, (B, T), 0, NUM_ACTIONS)
    context_next_states = jax.random.normal(kn, (B, T, NUM_STATES), jnp.float32)
    context_rewards = jax.random.normal(kr, (B, T), jnp.float32)

    params = init_params(kp)

    fwd = jax.jit(dpt_forward)
    out = jax.block_until_ready(fwd(params, query_state, context_states,
                                    context_actions, context_next_states,
                                    context_rewards))

    assert out.shape == (B, NUM_ACTIONS), out.shape
    assert bool(jnp.all(jnp.isfinite(out)))
    print("KERNEL_OK")
</pallas_src>

<mosaic_0001>
module attributes {stable_mosaic.version = 11 : i64} {
  func.func @_dpt_fused_kernel(%arg0: i32, %arg1: memref<16x16xf32, #tpu.memory_space<vmem>>, %arg2: memref<16x32xbf16, #tpu.memory_space<vmem>>, %arg3: memref<1x32xf32, #tpu.memory_space<vmem>>, %arg4: memref<2x6x32xf32, #tpu.memory_space<vmem>>, %arg5: memref<2x32x96xbf16, #tpu.memory_space<vmem>>, %arg6: memref<2x1x96xf32, #tpu.memory_space<vmem>>, %arg7: memref<2x32x32xbf16, #tpu.memory_space<vmem>>, %arg8: memref<2x32x128xbf16, #tpu.memory_space<vmem>>, %arg9: memref<2x1x128xf32, #tpu.memory_space<vmem>>, %arg10: memref<2x128x32xbf16, #tpu.memory_space<vmem>>, %arg11: memref<32x4xbf16, #tpu.memory_space<vmem>>, %arg12: memref<1x4xf32, #tpu.memory_space<vmem>>, %arg13: memref<1x1x4xf32, #tpu.memory_space<vmem>>) attributes {dimension_semantics = [#tpu.dimension_semantics<parallel>], iteration_bounds = array<i64: 2>, scalar_prefetch = 0 : i64, scratch_operands = 0 : i64, tpu.core_type = #tpu.core_type<tc>, window_params = [{transform_indices = @transform_0, window_bounds = array<i64: 16, 16>}, {pipeline_mode = #tpu.pipeline_mode<synchronous>, transform_indices = @transform_1, window_bounds = array<i64: 16, 32>}, {pipeline_mode = #tpu.pipeline_mode<synchronous>, transform_indices = @transform_2, window_bounds = array<i64: 1, 32>}, {pipeline_mode = #tpu.pipeline_mode<synchronous>, transform_indices = @transform_3, window_bounds = array<i64: 2, 6, 32>}, {pipeline_mode = #tpu.pipeline_mode<synchronous>, transform_indices = @transform_4, window_bounds = array<i64: 2, 32, 96>}, {pipeline_mode = #tpu.pipeline_mode<synchronous>, transform_indices = @transform_5, window_bounds = array<i64: 2, 1, 96>}, {pipeline_mode = #tpu.pipeline_mode<synchronous>, transform_indices = @transform_6, window_bounds = array<i64: 2, 32, 32>}, {pipeline_mode = #tpu.pipeline_mode<synchronous>, transform_indices = @transform_7, window_bounds = array<i64: 2, 32, 128>}, {pipeline_mode = #tpu.pipeline_mode<synchronous>, transform_indices = @transform_8, window_bounds = array<i64: 2, 1, 128>}, {pipeline_mode = #tpu.pipeline_mode<synchronous>, transform_indices = @transform_9, window_bounds = array<i64: 2, 128, 32>}, {pipeline_mode = #tpu.pipeline_mode<synchronous>, transform_indices = @transform_10, window_bounds = array<i64: 32, 4>}, {pipeline_mode = #tpu.pipeline_mode<synchronous>, transform_indices = @transform_11, window_bounds = array<i64: 1, 4>}, {transform_indices = @transform_12, window_bounds = array<i64: 1, 1, 4>}]} {
    %c0 = arith.constant 0 : index
    %c0_0 = arith.constant 0 : index
    %0 = vector.load %arg1[%c0, %c0_0] : memref<16x16xf32, #tpu.memory_space<vmem>>, vector<16x16xf32>
    %1 = arith.truncf %0 : vector<16x16xf32> to vector<16x16xbf16>
    %c0_1 = arith.constant 0 : index
    %c0_2 = arith.constant 0 : index
    %2 = vector.load %arg2[%c0_1, %c0_2] : memref<16x32xbf16, #tpu.memory_space<vmem>>, vector<16x32xbf16>
    %cst = arith.constant dense<0.000000e+00> : vector<16x32xf32>
    %3 = tpu.matmul %1, %2, %cst {dimension_numbers = #tpu.dot_dimension_numbers<[1], [0], [0], [1], [0, 0, 1, 1], [], []>} : vector<16x16xbf16>, vector<16x32xbf16>, vector<16x32xf32> -> vector<16x32xf32>
    %c0_3 = arith.constant 0 : index
    %c0_4 = arith.constant 0 : index
    %4 = vector.load %arg3[%c0_3, %c0_4] : memref<1x32xf32, #tpu.memory_space<vmem>>, vector<1x32xf32>
    %5 = vector.broadcast %4 : vector<1x32xf32> to vector<16x32xf32>
    %6 = arith.addf %3, %5 : vector<16x32xf32>
    %7 = tpu.iota {dimensions = array<i32: 1>} : vector<1x16x16xi32>
    %8 = tpu.iota {dimensions = array<i32: 2>} : vector<1x16x16xi32>
    %9 = arith.cmpi sge, %7, %8 : vector<1x16x16xi32>
    %c0_5 = arith.constant 0 : index
    %c0_6 = arith.constant 0 : index
    %c0_7 = arith.constant 0 : index
    %10 = vector.load %arg4[%c0_5, %c0_6, %c0_7] : memref<2x6x32xf32, #tpu.memory_space<vmem>>, vector<1x6x32xf32>
    %11 = vector.shape_cast %10 : vector<1x6x32xf32> to vector<6x32xf32>
    %12 = vector.extract_strided_slice %11 {offsets = [0, 0], sizes = [1, 32], strides = [1, 1]} : vector<6x32xf32> to vector<1x32xf32>
    %13 = vector.extract_strided_slice %11 {offsets = [1, 0], sizes = [1, 32], strides = [1, 1]} : vector<6x32xf32> to vector<1x32xf32>
    %14 = vector.extract_strided_slice %11 {offsets = [2, 0], sizes = [1, 32], strides = [1, 1]} : vector<6x32xf32> to vector<1x32xf32>
    %15 = vector.extract_strided_slice %11 {offsets = [3, 0], sizes = [1, 32], strides = [1, 1]} : vector<6x32xf32> to vector<1x32xf32>
    %16 = vector.extract_strided_slice %11 {offsets = [4, 0], sizes = [1, 32], strides = [1, 1]} : vector<6x32xf32> to vector<1x32xf32>
    %17 = vector.extract_strided_slice %11 {offsets = [5, 0], sizes = [1, 32], strides = [1, 1]} : vector<6x32xf32> to vector<1x32xf32>
    %cst_8 = arith.constant dense<0.000000e+00> : vector<16xf32>
    %18 = vector.multi_reduction <add>, %6, %cst_8 [1] : vector<16x32xf32> to vector<16xf32>
    %19 = vector.shape_cast %18 : vector<16xf32> to vector<16x1xf32>
    %cst_9 = arith.constant 3.200000e+01 : f32
    %20 = vector.broadcast %cst_9 : f32 to vector<16x1xf32>
    %21 = arith.divf %19, %20 : vector<16x1xf32>
    %22 = vector.broadcast %21 : vector<16x1xf32> to vector<16x32xf32>
    %23 = arith.subf %6, %22 : vector<16x32xf32>
    %24 = arith.mulf %23, %23 : vector<16x32xf32>
    %cst_10 = arith.constant dense<0.000000e+00> : vector<16xf32>
    %25 = vector.multi_reduction <add>, %24, %cst_10 [1] : vector<16x32xf32> to vector<16xf32>
    %26 = vector.shape_cast %25 : vector<16xf32> to vector<16x1xf32>
    %cst_11 = arith.constant 3.200000e+01 : f32
    %27 = vector.broadcast %cst_11 : f32 to vector<16x1xf32>
    %28 = arith.divf %26, %27 : vector<16x1xf32>
    %cst_12 = arith.constant 9.99999974E-6 : f32
    %29 = vector.broadcast %cst_12 : f32 to vector<16x1xf32>
    %30 = arith.addf %28, %29 : vector<16x1xf32>
    %31 = math.rsqrt %30 : vector<16x1xf32>
    %32 = vector.broadcast %31 : vector<16x1xf32> to vector<16x32xf32>
    %33 = arith.mulf %23, %32 : vector<16x32xf32>
    %34 = vector.broadcast %12 : vector<1x32xf32> to vector<16x32xf32>
    %35 = arith.mulf %33, %34 : vector<16x32xf32>
    %36 = vector.broadcast %13 : vector<1x32xf32> to vector<16x32xf32>
    %37 = arith.addf %35, %36 : vector<16x32xf32>
    %38 = arith.truncf %37 : vector<16x32xf32> to vector<16x32xbf16>
    %c0_13 = arith.constant 0 : index
    %c0_14 = arith.constant 0 : index
    %c0_15 = arith.constant 0 : index
    %39 = vector.load %arg5[%c0_13, %c0_14, %c0_15] : memref<2x32x96xbf16, #tpu.memory_space<vmem>>, vector<1x32x96xbf16>
    %40 = vector.shape_cast %39 : vector<1x32x96xbf16> to vector<32x96xbf16>
    %cst_16 = arith.constant dense<0.000000e+00> : vector<16x96xf32>
    %41 = tpu.matmul %38, %40, %cst_16 {dimension_numbers = #tpu.dot_dimension_numbers<[1], [0], [0], [1], [0, 0, 1, 1], [], []>} : vector<16x32xbf16>, vector<32x96xbf16>, vector<16x96xf32> -> vector<16x96xf32>
    %c0_17 = arith.constant 0 : index
    %c0_18 = arith.constant 0 : index
    %c0_19 = arith.constant 0 : index
    %42 = vector.load %arg6[%c0_17, %c0_18, %c0_19] : memref<2x1x96xf32, #tpu.memory_space<vmem>>, vector<1x1x96xf32>
    %43 = vector.shape_cast %42 : vector<1x1x96xf32> to vector<1x96xf32>
    %44 = vector.broadcast %43 : vector<1x96xf32> to vector<16x96xf32>
    %45 = arith.addf %41, %44 : vector<16x96xf32>
    %46 = vector.shape_cast %45 : vector<16x96xf32> to vector<1x16x96xf32>
    %47 = vector.extract_strided_slice %46 {offsets = [0, 0, 0], sizes = [1, 16, 32], strides = [1, 1, 1]} : vector<1x16x96xf32> to vector<1x16x32xf32>
    %48 = arith.truncf %47 : vector<1x16x32xf32> to vector<1x16x32xbf16>
    %49 = vector.extract_strided_slice %46 {offsets = [0, 0, 32], sizes = [1, 16, 32], strides = [1, 1, 1]} : vector<1x16x96xf32> to vector<1x16x32xf32>
    %50 = arith.truncf %49 : vector<1x16x32xf32> to vector<1x16x32xbf16>
    %51 = vector.extract_strided_slice %46 {offsets = [0, 0, 64], sizes = [1, 16, 32], strides = [1, 1, 1]} : vector<1x16x96xf32> to vector<1x16x32xf32>
    %52 = arith.truncf %51 : vector<1x16x32xf32> to vector<1x16x32xbf16>
    %53 = vector.extract_strided_slice %48 {offsets = [0, 0, 0], sizes = [1, 16, 8], strides = [1, 1, 1]} : vector<1x16x32xbf16> to vector<1x16x8xbf16>
    %54 = vector.extract_strided_slice %50 {offsets = [0, 0, 0], sizes = [1, 16, 8], strides = [1, 1, 1]} : vector<1x16x32xbf16> to vector<1x16x8xbf16>
    "tpu.trace_start"() <{level = 10 : i32, message = "bqd,bkd->bqk"}> : () -> ()
    %cst_20 = arith.constant dense<0.000000e+00> : vector<1x16x16xf32>
    %55 = tpu.matmul %53, %54, %cst_20 {dimension_numbers = #tpu.dot_dimension_numbers<[2], [2], [1], [1], [0, 0, 0, 1, 1, 1], [0], [0]>} : vector<1x16x8xbf16>, vector<1x16x8xbf16>, vector<1x16x16xf32> -> vector<1x16x16xf32>
    %cst_21 = arith.constant -1.000000e+30 : f32
    "tpu.trace_stop"() : () -> ()
    %56 = vector.broadcast %cst_21 : f32 to vector<1x16x16xf32>
    %57 = arith.select %9, %55, %56 : vector<1x16x16xi1>, vector<1x16x16xf32>
    %cst_22 = arith.constant dense<0xFF800000> : vector<1x16xf32>
    %58 = vector.multi_reduction <maximumf>, %57, %cst_22 [2] : vector<1x16x16xf32> to vector<1x16xf32>
    %59 = vector.shape_cast %58 : vector<1x16xf32> to vector<1x16x1xf32>
    %60 = vector.broadcast %59 : vector<1x16x1xf32> to vector<1x16x16xf32>
    %61 = arith.subf %57, %60 : vector<1x16x16xf32>
    %62 = math.exp %61 : vector<1x16x16xf32>
    %cst_23 = arith.constant dense<0.000000e+00> : vector<1x16xf32>
    %63 = vector.multi_reduction <add>, %62, %cst_23 [2] : vector<1x16x16xf32> to vector<1x16xf32>
    %64 = vector.shape_cast %63 : vector<1x16xf32> to vector<1x16x1xf32>
    %65 = tpu.reciprocal %64 {approx = true} : vector<1x16x1xf32> -> vector<1x16x1xf32>
    %66 = vector.broadcast %65 : vector<1x16x1xf32> to vector<1x16x16xf32>
    %67 = arith.mulf %62, %66 : vector<1x16x16xf32>
    %68 = arith.truncf %67 : vector<1x16x16xf32> to vector<1x16x16xbf16>
    %69 = vector.extract_strided_slice %52 {offsets = [0, 0, 0], sizes = [1, 16, 8], strides = [1, 1, 1]} : vector<1x16x32xbf16> to vector<1x16x8xbf16>
    "tpu.trace_start"() <{level = 10 : i32, message = "bqk,bkd->bqd"}> : () -> ()
    %cst_24 = arith.constant dense<0.000000e+00> : vector<1x16x8xf32>
    %70 = tpu.matmul %68, %69, %cst_24 {dimension_numbers = #tpu.dot_dimension_numbers<[2], [1], [1], [2], [0, 0, 0, 1, 1, 2], [0], [0]>} : vector<1x16x16xbf16>, vector<1x16x8xbf16>, vector<1x16x8xf32> -> vector<1x16x8xf32>
    "tpu.trace_stop"() : () -> ()
    %71 = vector.extract_strided_slice %48 {offsets = [0, 0, 8], sizes = [1, 16, 8], strides = [1, 1, 1]} : vector<1x16x32xbf16> to vector<1x16x8xbf16>
    %72 = vector.extract_strided_slice %50 {offsets = [0, 0, 8], sizes = [1, 16, 8], strides = [1, 1, 1]} : vector<1x16x32xbf16> to vector<1x16x8xbf16>
    "tpu.trace_start"() <{level = 10 : i32, message = "bqd,bkd->bqk"}> : () -> ()
    %cst_25 = arith.constant dense<0.000000e+00> : vector<1x16x16xf32>
    %73 = tpu.matmul %71, %72, %cst_25 {dimension_numbers = #tpu.dot_dimension_numbers<[2], [2], [1], [1], [0, 0, 0, 1, 1, 1], [0], [0]>} : vector<1x16x8xbf16>, vector<1x16x8xbf16>, vector<1x16x16xf32> -> vector<1x16x16xf32>
    %cst_26 = arith.constant -1.000000e+30 : f32
    "tpu.trace_stop"() : () -> ()
    %74 = vector.broadcast %cst_26 : f32 to vector<1x16x16xf32>
    %75 = arith.select %9, %73, %74 : vector<1x16x16xi1>, vector<1x16x16xf32>
    %cst_27 = arith.constant dense<0xFF800000> : vector<1x16xf32>
    %76 = vector.multi_reduction <maximumf>, %75, %cst_27 [2] : vector<1x16x16xf32> to vector<1x16xf32>
    %77 = vector.shape_cast %76 : vector<1x16xf32> to vector<1x16x1xf32>
    %78 = vector.broadcast %77 : vector<1x16x1xf32> to vector<1x16x16xf32>
    %79 = arith.subf %75, %78 : vector<1x16x16xf32>
    %80 = math.exp %79 : vector<1x16x16xf32>
    %cst_28 = arith.constant dense<0.000000e+00> : vector<1x16xf32>
    %81 = vector.multi_reduction <add>, %80, %cst_28 [2] : vector<1x16x16xf32> to vector<1x16xf32>
    %82 = vector.shape_cast %81 : vector<1x16xf32> to vector<1x16x1xf32>
    %83 = tpu.reciprocal %82 {approx = true} : vector<1x16x1xf32> -> vector<1x16x1xf32>
    %84 = vector.broadcast %83 : vector<1x16x1xf32> to vector<1x16x16xf32>
    %85 = arith.mulf %80, %84 : vector<1x16x16xf32>
    %86 = arith.truncf %85 : vector<1x16x16xf32> to vector<1x16x16xbf16>
    %87 = vector.extract_strided_slice %52 {offsets = [0, 0, 8], sizes = [1, 16, 8], strides = [1, 1, 1]} : vector<1x16x32xbf16> to vector<1x16x8xbf16>
    "tpu.trace_start"() <{level = 10 : i32, message = "bqk,bkd->bqd"}> : () -> ()
    %cst_29 = arith.constant dense<0.000000e+00> : vector<1x16x8xf32>
    %88 = tpu.matmul %86, %87, %cst_29 {dimension_numbers = #tpu.dot_dimension_numbers<[2], [1], [1], [2], [0, 0, 0, 1, 1, 2], [0], [0]>} : vector<1x16x16xbf16>, vector<1x16x8xbf16>, vector<1x16x8xf32> -> vector<1x16x8xf32>
    "tpu.trace_stop"() : () -> ()
    %89 = vector.extract_strided_slice %48 {offsets = [0, 0, 16], sizes = [1, 16, 8], strides = [1, 1, 1]} : vector<1x16x32xbf16> to vector<1x16x8xbf16>
    %90 = vector.extract_strided_slice %50 {offsets = [0, 0, 16], sizes = [1, 16, 8], strides = [1, 1, 1]} : vector<1x16x32xbf16> to vector<1x16x8xbf16>
    "tpu.trace_start"() <{level = 10 : i32, message = "bqd,bkd->bqk"}> : () -> ()
    %cst_30 = arith.constant dense<0.000000e+00> : vector<1x16x16xf32>
    %91 = tpu.matmul %89, %90, %cst_30 {dimension_numbers = #tpu.dot_dimension_numbers<[2], [2], [1], [1], [0, 0, 0, 1, 1, 1], [0], [0]>} : vector<1x16x8xbf16>, vector<1x16x8xbf16>, vector<1x16x16xf32> -> vector<1x16x16xf32>
    %cst_31 = arith.constant -1.000000e+30 : f32
    "tpu.trace_stop"() : () -> ()
    %92 = vector.broadcast %cst_31 : f32 to vector<1x16x16xf32>
    %93 = arith.select %9, %91, %92 : vector<1x16x16xi1>, vector<1x16x16xf32>
    %cst_32 = arith.constant dense<0xFF800000> : vector<1x16xf32>
    %94 = vector.multi_reduction <maximumf>, %93, %cst_32 [2] : vector<1x16x16xf32> to vector<1x16xf32>
    %95 = vector.shape_cast %94 : vector<1x16xf32> to vector<1x16x1xf32>
    %96 = vector.broadcast %95 : vector<1x16x1xf32> to vector<1x16x16xf32>
    %97 = arith.subf %93, %96 : vector<1x16x16xf32>
    %98 = math.exp %97 : vector<1x16x16xf32>
    %cst_33 = arith.constant dense<0.000000e+00> : vector<1x16xf32>
    %99 = vector.multi_reduction <add>, %98, %cst_33 [2] : vector<1x16x16xf32> to vector<1x16xf32>
    %100 = vector.shape_cast %99 : vector<1x16xf32> to vector<1x16x1xf32>
    %101 = tpu.reciprocal %100 {approx = true} : vector<1x16x1xf32> -> vector<1x16x1xf32>
    %102 = vector.broadcast %101 : vector<1x16x1xf32> to vector<1x16x16xf32>
    %103 = arith.mulf %98, %102 : vector<1x16x16xf32>
    %104 = arith.truncf %103 : vector<1x16x16xf32> to vector<1x16x16xbf16>
    %105 = vector.extract_strided_slice %52 {offsets = [0, 0, 16], sizes = [1, 16, 8], strides = [1, 1, 1]} : vector<1x16x32xbf16> to vector<1x16x8xbf16>
    "tpu.trace_start"() <{level = 10 : i32, message = "bqk,bkd->bqd"}> : () -> ()
    %cst_34 = arith.constant dense<0.000000e+00> : vector<1x16x8xf32>
    %106 = tpu.matmul %104, %105, %cst_34 {dimension_numbers = #tpu.dot_dimension_numbers<[2], [1], [1], [2], [0, 0, 0, 1, 1, 2], [0], [0]>} : vector<1x16x16xbf16>, vector<1x16x8xbf16>, vector<1x16x8xf32> -> vector<1x16x8xf32>
    "tpu.trace_stop"() : () -> ()
    %107 = vector.extract_strided_slice %48 {offsets = [0, 0, 24], sizes = [1, 16, 8], strides = [1, 1, 1]} : vector<1x16x32xbf16> to vector<1x16x8xbf16>
    %108 = vector.extract_strided_slice %50 {offsets = [0, 0, 24], sizes = [1, 16, 8], strides = [1, 1, 1]} : vector<1x16x32xbf16> to vector<1x16x8xbf16>
    "tpu.trace_start"() <{level = 10 : i32, message = "bqd,bkd->bqk"}> : () -> ()
    %cst_35 = arith.constant dense<0.000000e+00> : vector<1x16x16xf32>
    %109 = tpu.matmul %107, %108, %cst_35 {dimension_numbers = #tpu.dot_dimension_numbers<[2], [2], [1], [1], [0, 0, 0, 1, 1, 1], [0], [0]>} : vector<1x16x8xbf16>, vector<1x16x8xbf16>, vector<1x16x16xf32> -> vector<1x16x16xf32>
    %cst_36 = arith.constant -1.000000e+30 : f32
    "tpu.trace_stop"() : () -> ()
    %110 = vector.broadcast %cst_36 : f32 to vector<1x16x16xf32>
    %111 = arith.select %9, %109, %110 : vector<1x16x16xi1>, vector<1x16x16xf32>
    %cst_37 = arith.constant dense<0xFF800000> : vector<1x16xf32>
    %112 = vector.multi_reduction <maximumf>, %111, %cst_37 [2] : vector<1x16x16xf32> to vector<1x16xf32>
    %113 = vector.shape_cast %112 : vector<1x16xf32> to vector<1x16x1xf32>
    %114 = vector.broadcast %113 : vector<1x16x1xf32> to vector<1x16x16xf32>
    %115 = arith.subf %111, %114 : vector<1x16x16xf32>
    %116 = math.exp %115 : vector<1x16x16xf32>
    %cst_38 = arith.constant dense<0.000000e+00> : vector<1x16xf32>
    %117 = vector.multi_reduction <add>, %116, %cst_38 [2] : vector<1x16x16xf32> to vector<1x16xf32>
    %118 = vector.shape_cast %117 : vector<1x16xf32> to vector<1x16x1xf32>
    %119 = tpu.reciprocal %118 {approx = true} : vector<1x16x1xf32> -> vector<1x16x1xf32>
    %120 = vector.broadcast %119 : vector<1x16x1xf32> to vector<1x16x16xf32>
    %121 = arith.mulf %116, %120 : vector<1x16x16xf32>
    %122 = arith.truncf %121 : vector<1x16x16xf32> to vector<1x16x16xbf16>
    %123 = vector.extract_strided_slice %52 {offsets = [0, 0, 24], sizes = [1, 16, 8], strides = [1, 1, 1]} : vector<1x16x32xbf16> to vector<1x16x8xbf16>
    "tpu.trace_start"() <{level = 10 : i32, message = "bqk,bkd->bqd"}> : () -> ()
    %cst_39 = arith.constant dense<0.000000e+00> : vector<1x16x8xf32>
    %124 = tpu.matmul %122, %123, %cst_39 {dimension_numbers = #tpu.dot_dimension_numbers<[2], [1], [1], [2], [0, 0, 0, 1, 1, 2], [0], [0]>} : vector<1x16x16xbf16>, vector<1x16x8xbf16>, vector<1x16x8xf32> -> vector<1x16x8xf32>
    "tpu.trace_stop"() : () -> ()
    %125 = tpu.concatenate %70, %88, %106, %124 in 2 : vector<1x16x8xf32>, vector<1x16x8xf32>, vector<1x16x8xf32>, vector<1x16x8xf32> -> vector<1x16x32xf32>
    %126 = vector.shape_cast %125 : vector<1x16x32xf32> to vector<16x32xf32>
    %127 = arith.truncf %126 : vector<16x32xf32> to vector<16x32xbf16>
    %c0_40 = arith.constant 0 : index
    %c0_41 = arith.constant 0 : index
    %c0_42 = arith.constant 0 : index
    %128 = vector.load %arg7[%c0_40, %c0_41, %c0_42] : memref<2x32x32xbf16, #tpu.memory_space<vmem>>, vector<1x32x32xbf16>
    %129 = vector.shape_cast %128 : vector<1x32x32xbf16> to vector<32x32xbf16>
    %cst_43 = arith.constant dense<0.000000e+00> : vector<16x32xf32>
    %130 = tpu.matmul %127, %129, %cst_43 {dimension_numbers = #tpu.dot_dimension_numbers<[1], [0], [0], [1], [0, 0, 1, 1], [], []>} : vector<16x32xbf16>, vector<32x32xbf16>, vector<16x32xf32> -> vector<16x32xf32>
    %131 = vector.broadcast %14 : vector<1x32xf32> to vector<16x32xf32>
    %132 = arith.addf %130, %131 : vector<16x32xf32>
    %133 = arith.addf %6, %132 : vector<16x32xf32>
    %cst_44 = arith.constant dense<0.000000e+00> : vector<16xf32>
    %134 = vector.multi_reduction <add>, %133, %cst_44 [1] : vector<16x32xf32> to vector<16xf32>
    %135 = vector.shape_cast %134 : vector<16xf32> to vector<16x1xf32>
    %cst_45 = arith.constant 3.200000e+01 : f32
    %136 = vector.broadcast %cst_45 : f32 to vector<16x1xf32>
    %137 = arith.divf %135, %136 : vector<16x1xf32>
    %138 = vector.broadcast %137 : vector<16x1xf32> to vector<16x32xf32>
    %139 = arith.subf %133, %138 : vector<16x32xf32>
    %140 = arith.mulf %139, %139 : vector<16x32xf32>
    %cst_46 = arith.constant dense<0.000000e+00> : vector<16xf32>
    %141 = vector.multi_reduction <add>, %140, %cst_46 [1] : vector<16x32xf32> to vector<16xf32>
    %142 = vector.shape_cast %141 : vector<16xf32> to vector<16x1xf32>
    %cst_47 = arith.constant 3.200000e+01 : f32
    %143 = vector.broadcast %cst_47 : f32 to vector<16x1xf32>
    %144 = arith.divf %142, %143 : vector<16x1xf32>
    %cst_48 = arith.constant 9.99999974E-6 : f32
    %145 = vector.broadcast %cst_48 : f32 to vector<16x1xf32>
    %146 = arith.addf %144, %145 : vector<16x1xf32>
    %147 = math.rsqrt %146 : vector<16x1xf32>
    %148 = vector.broadcast %147 : vector<16x1xf32> to vector<16x32xf32>
    %149 = arith.mulf %139, %148 : vector<16x32xf32>
    %150 = vector.broadcast %15 : vector<1x32xf32> to vector<16x32xf32>
    %151 = arith.mulf %149, %150 : vector<16x32xf32>
    %152 = vector.broadcast %16 : vector<1x32xf32> to vector<16x32xf32>
    %153 = arith.addf %151, %152 : vector<16x32xf32>
    %154 = arith.truncf %153 : vector<16x32xf32> to vector<16x32xbf16>
    %c0_49 = arith.constant 0 : index
    %c0_50 = arith.constant 0 : index
    %c0_51 = arith.constant 0 : index
    %155 = vector.load %arg8[%c0_49, %c0_50, %c0_51] : memref<2x32x128xbf16, #tpu.memory_space<vmem>>, vector<1x32x128xbf16>
    %156 = vector.shape_cast %155 : vector<1x32x128xbf16> to vector<32x128xbf16>
    %cst_52 = arith.constant dense<0.000000e+00> : vector<16x128xf32>
    %157 = tpu.matmul %154, %156, %cst_52 {dimension_numbers = #tpu.dot_dimension_numbers<[1], [0], [0], [1], [0, 0, 1, 1], [], []>} : vector<16x32xbf16>, vector<32x128xbf16>, vector<16x128xf32> -> vector<16x128xf32>
    %c0_53 = arith.constant 0 : index
    %c0_54 = arith.constant 0 : index
    %c0_55 = arith.constant 0 : index
    %158 = vector.load %arg9[%c0_53, %c0_54, %c0_55] : memref<2x1x128xf32, #tpu.memory_space<vmem>>, vector<1x1x128xf32>
    %159 = vector.shape_cast %158 : vector<1x1x128xf32> to vector<1x128xf32>
    %160 = vector.broadcast %159 : vector<1x128xf32> to vector<16x128xf32>
    %161 = arith.addf %157, %160 : vector<16x128xf32>
    %cst_56 = arith.constant 5.000000e-01 : f32
    %162 = vector.broadcast %cst_56 : f32 to vector<16x128xf32>
    %163 = arith.mulf %162, %161 : vector<16x128xf32>
    %cst_57 = arith.constant 4.471500e-02 : f32
    %164 = vector.broadcast %cst_57 : f32 to vector<16x128xf32>
    %165 = arith.mulf %164, %161 : vector<16x128xf32>
    %166 = arith.mulf %165, %161 : vector<16x128xf32>
    %167 = arith.mulf %166, %161 : vector<16x128xf32>
    %168 = arith.addf %161, %167 : vector<16x128xf32>
    %cst_58 = arith.constant 0.797884583 : f32
    %169 = vector.broadcast %cst_58 : f32 to vector<16x128xf32>
    %170 = arith.mulf %169, %168 : vector<16x128xf32>
    %171 = math.tanh %170 : vector<16x128xf32>
    %cst_59 = arith.constant 1.000000e+00 : f32
    %172 = vector.broadcast %cst_59 : f32 to vector<16x128xf32>
    %173 = arith.addf %172, %171 : vector<16x128xf32>
    %174 = arith.mulf %163, %173 : vector<16x128xf32>
    %175 = arith.truncf %174 : vector<16x128xf32> to vector<16x128xbf16>
    %c0_60 = arith.constant 0 : index
    %c0_61 = arith.constant 0 : index
    %c0_62 = arith.constant 0 : index
    %176 = vector.load %arg10[%c0_60, %c0_61, %c0_62] : memref<2x128x32xbf16, #tpu.memory_space<vmem>>, vector<1x128x32xbf16>
    %177 = vector.shape_cast %176 : vector<1x128x32xbf16> to vector<128x32xbf16>
    %cst_63 = arith.constant dense<0.000000e+00> : vector<16x32xf32>
    %178 = tpu.matmul %175, %177, %cst_63 {dimension_numbers = #tpu.dot_dimension_numbers<[1], [0], [0], [1], [0, 0, 1, 1], [], []>} : vector<16x128xbf16>, vector<128x32xbf16>, vector<16x32xf32> -> vector<16x32xf32>
    %179 = vector.broadcast %17 : vector<1x32xf32> to vector<16x32xf32>
    %180 = arith.addf %178, %179 : vector<16x32xf32>
    %181 = arith.addf %133, %180 : vector<16x32xf32>
    %c1 = arith.constant 1 : index
    %c0_64 = arith.constant 0 : index
    %c0_65 = arith.constant 0 : index
    %182 = vector.load %arg4[%c1, %c0_64, %c0_65] : memref<2x6x32xf32, #tpu.memory_space<vmem>>, vector<1x6x32xf32>
    %183 = vector.shape_cast %182 : vector<1x6x32xf32> to vector<6x32xf32>
    %184 = vector.extract_strided_slice %183 {offsets = [0, 0], sizes = [1, 32], strides = [1, 1]} : vector<6x32xf32> to vector<1x32xf32>
    %185 = vector.extract_strided_slice %183 {offsets = [1, 0], sizes = [1, 32], strides = [1, 1]} : vector<6x32xf32> to vector<1x32xf32>
    %186 = vector.extract_strided_slice %183 {offsets = [2, 0], sizes = [1, 32], strides = [1, 1]} : vector<6x32xf32> to vector<1x32xf32>
    %187 = vector.extract_strided_slice %183 {offsets = [3, 0], sizes = [1, 32], strides = [1, 1]} : vector<6x32xf32> to vector<1x32xf32>
    %188 = vector.extract_strided_slice %183 {offsets = [4, 0], sizes = [1, 32], strides = [1, 1]} : vector<6x32xf32> to vector<1x32xf32>
    %189 = vector.extract_strided_slice %183 {offsets = [5, 0], sizes = [1, 32], strides = [1, 1]} : vector<6x32xf32> to vector<1x32xf32>
    %cst_66 = arith.constant dense<0.000000e+00> : vector<16xf32>
    %190 = vector.multi_reduction <add>, %181, %cst_66 [1] : vector<16x32xf32> to vector<16xf32>
    %191 = vector.shape_cast %190 : vector<16xf32> to vector<16x1xf32>
    %cst_67 = arith.constant 3.200000e+01 : f32
    %192 = vector.broadcast %cst_67 : f32 to vector<16x1xf32>
    %193 = arith.divf %191, %192 : vector<16x1xf32>
    %194 = vector.broadcast %193 : vector<16x1xf32> to vector<16x32xf32>
    %195 = arith.subf %181, %194 : vector<16x32xf32>
    %196 = arith.mulf %195, %195 : vector<16x32xf32>
    %cst_68 = arith.constant dense<0.000000e+00> : vector<16xf32>
    %197 = vector.multi_reduction <add>, %196, %cst_68 [1] : vector<16x32xf32> to vector<16xf32>
    %198 = vector.shape_cast %197 : vector<16xf32> to vector<16x1xf32>
    %cst_69 = arith.constant 3.200000e+01 : f32
    %199 = vector.broadcast %cst_69 : f32 to vector<16x1xf32>
    %200 = arith.divf %198, %199 : vector<16x1xf32>
    %cst_70 = arith.constant 9.99999974E-6 : f32
    %201 = vector.broadcast %cst_70 : f32 to vector<16x1xf32>
    %202 = arith.addf %200, %201 : vector<16x1xf32>
    %203 = math.rsqrt %202 : vector<16x1xf32>
    %204 = vector.broadcast %203 : vector<16x1xf32> to vector<16x32xf32>
    %205 = arith.mulf %195, %204 : vector<16x32xf32>
    %206 = vector.broadcast %184 : vector<1x32xf32> to vector<16x32xf32>
    %207 = arith.mulf %205, %206 : vector<16x32xf32>
    %208 = vector.broadcast %185 : vector<1x32xf32> to vector<16x32xf32>
    %209 = arith.addf %207, %208 : vector<16x32xf32>
    %210 = arith.truncf %209 : vector<16x32xf32> to vector<16x32xbf16>
    %c1_71 = arith.constant 1 : index
    %c0_72 = arith.constant 0 : index
    %c0_73 = arith.constant 0 : index
    %211 = vector.load %arg5[%c1_71, %c0_72, %c0_73] : memref<2x32x96xbf16, #tpu.memory_space<vmem>>, vector<1x32x96xbf16>
    %212 = vector.shape_cast %211 : vector<1x32x96xbf16> to vector<32x96xbf16>
    %cst_74 = arith.constant dense<0.000000e+00> : vector<16x96xf32>
    %213 = tpu.matmul %210, %212, %cst_74 {dimension_numbers = #tpu.dot_dimension_numbers<[1], [0], [0], [1], [0, 0, 1, 1], [], []>} : vector<16x32xbf16>, vector<32x96xbf16>, vector<16x96xf32> -> vector<16x96xf32>
    %c1_75 = arith.constant 1 : index
    %c0_76 = arith.constant 0 : index
    %c0_77 = arith.constant 0 : index
    %214 = vector.load %arg6[%c1_75, %c0_76, %c0_77] : memref<2x1x96xf32, #tpu.memory_space<vmem>>, vector<1x1x96xf32>
    %215 = vector.shape_cast %214 : vector<1x1x96xf32> to vector<1x96xf32>
    %216 = vector.broadcast %215 : vector<1x96xf32> to vector<16x96xf32>
    %217 = arith.addf %213, %216 : vector<16x96xf32>
    %218 = vector.shape_cast %217 : vector<16x96xf32> to vector<1x16x96xf32>
    %219 = vector.extract_strided_slice %218 {offsets = [0, 0, 0], sizes = [1, 16, 32], strides = [1, 1, 1]} : vector<1x16x96xf32> to vector<1x16x32xf32>
    %220 = arith.truncf %219 : vector<1x16x32xf32> to vector<1x16x32xbf16>
    %221 = vector.extract_strided_slice %218 {offsets = [0, 0, 32], sizes = [1, 16, 32], strides = [1, 1, 1]} : vector<1x16x96xf32> to vector<1x16x32xf32>
    %222 = arith.truncf %221 : vector<1x16x32xf32> to vector<1x16x32xbf16>
    %223 = vector.extract_strided_slice %218 {offsets = [0, 0, 64], sizes = [1, 16, 32], strides = [1, 1, 1]} : vector<1x16x96xf32> to vector<1x16x32xf32>
    %224 = arith.truncf %223 : vector<1x16x32xf32> to vector<1x16x32xbf16>
    %225 = vector.extract_strided_slice %220 {offsets = [0, 0, 0], sizes = [1, 16, 8], strides = [1, 1, 1]} : vector<1x16x32xbf16> to vector<1x16x8xbf16>
    %226 = vector.extract_strided_slice %222 {offsets = [0, 0, 0], sizes = [1, 16, 8], strides = [1, 1, 1]} : vector<1x16x32xbf16> to vector<1x16x8xbf16>
    "tpu.trace_start"() <{level = 10 : i32, message = "bqd,bkd->bqk"}> : () -> ()
    %cst_78 = arith.constant dense<0.000000e+00> : vector<1x16x16xf32>
    %227 = tpu.matmul %225, %226, %cst_78 {dimension_numbers = #tpu.dot_dimension_numbers<[2], [2], [1], [1], [0, 0, 0, 1, 1, 1], [0], [0]>} : vector<1x16x8xbf16>, vector<1x16x8xbf16>, vector<1x16x16xf32> -> vector<1x16x16xf32>
    %cst_79 = arith.constant -1.000000e+30 : f32
    "tpu.trace_stop"() : () -> ()
    %228 = vector.broadcast %cst_79 : f32 to vector<1x16x16xf32>
    %229 = arith.select %9, %227, %228 : vector<1x16x16xi1>, vector<1x16x16xf32>
    %cst_80 = arith.constant dense<0xFF800000> : vector<1x16xf32>
    %230 = vector.multi_reduction <maximumf>, %229, %cst_80 [2] : vector<1x16x16xf32> to vector<1x16xf32>
    %231 = vector.shape_cast %230 : vector<1x16xf32> to vector<1x16x1xf32>
    %232 = vector.broadcast %231 : vector<1x16x1xf32> to vector<1x16x16xf32>
    %233 = arith.subf %229, %232 : vector<1x16x16xf32>
    %234 = math.exp %233 : vector<1x16x16xf32>
    %cst_81 = arith.constant dense<0.000000e+00> : vector<1x16xf32>
    %235 = vector.multi_reduction <add>, %234, %cst_81 [2] : vector<1x16x16xf32> to vector<1x16xf32>
    %236 = vector.shape_cast %235 : vector<1x16xf32> to vector<1x16x1xf32>
    %237 = tpu.reciprocal %236 {approx = true} : vector<1x16x1xf32> -> vector<1x16x1xf32>
    %238 = vector.broadcast %237 : vector<1x16x1xf32> to vector<1x16x16xf32>
    %239 = arith.mulf %234, %238 : vector<1x16x16xf32>
    %240 = arith.truncf %239 : vector<1x16x16xf32> to vector<1x16x16xbf16>
    %241 = vector.extract_strided_slice %224 {offsets = [0, 0, 0], sizes = [1, 16, 8], strides = [1, 1, 1]} : vector<1x16x32xbf16> to vector<1x16x8xbf16>
    "tpu.trace_start"() <{level = 10 : i32, message = "bqk,bkd->bqd"}> : () -> ()
    %cst_82 = arith.constant dense<0.000000e+00> : vector<1x16x8xf32>
    %242 = tpu.matmul %240, %241, %cst_82 {dimension_numbers = #tpu.dot_dimension_numbers<[2], [1], [1], [2], [0, 0, 0, 1, 1, 2], [0], [0]>} : vector<1x16x16xbf16>, vector<1x16x8xbf16>, vector<1x16x8xf32> -> vector<1x16x8xf32>
    "tpu.trace_stop"() : () -> ()
    %243 = vector.extract_strided_slice %220 {offsets = [0, 0, 8], sizes = [1, 16, 8], strides = [1, 1, 1]} : vector<1x16x32xbf16> to vector<1x16x8xbf16>
    %244 = vector.extract_strided_slice %222 {offsets = [0, 0, 8], sizes = [1, 16, 8], strides = [1, 1, 1]} : vector<1x16x32xbf16> to vector<1x16x8xbf16>
    "tpu.trace_start"() <{level = 10 : i32, message = "bqd,bkd->bqk"}> : () -> ()
    %cst_83 = arith.constant dense<0.000000e+00> : vector<1x16x16xf32>
    %245 = tpu.matmul %243, %244, %cst_83 {dimension_numbers = #tpu.dot_dimension_numbers<[2], [2], [1], [1], [0, 0, 0, 1, 1, 1], [0], [0]>} : vector<1x16x8xbf16>, vector<1x16x8xbf16>, vector<1x16x16xf32> -> vector<1x16x16xf32>
    %cst_84 = arith.constant -1.000000e+30 : f32
    "tpu.trace_stop"() : () -> ()
    %246 = vector.broadcast %cst_84 : f32 to vector<1x16x16xf32>
    %247 = arith.select %9, %245, %246 : vector<1x16x16xi1>, vector<1x16x16xf32>
    %cst_85 = arith.constant dense<0xFF800000> : vector<1x16xf32>
    %248 = vector.multi_reduction <maximumf>, %247, %cst_85 [2] : vector<1x16x16xf32> to vector<1x16xf32>
    %249 = vector.shape_cast %248 : vector<1x16xf32> to vector<1x16x1xf32>
    %250 = vector.broadcast %249 : vector<1x16x1xf32> to vector<1x16x16xf32>
    %251 = arith.subf %247, %250 : vector<1x16x16xf32>
    %252 = math.exp %251 : vector<1x16x16xf32>
    %cst_86 = arith.constant dense<0.000000e+00> : vector<1x16xf32>
    %253 = vector.multi_reduction <add>, %252, %cst_86 [2] : vector<1x16x16xf32> to vector<1x16xf32>
    %254 = vector.shape_cast %253 : vector<1x16xf32> to vector<1x16x1xf32>
    %255 = tpu.reciprocal %254 {approx = true} : vector<1x16x1xf32> -> vector<1x16x1xf32>
    %256 = vector.broadcast %255 : vector<1x16x1xf32> to vector<1x16x16xf32>
    %257 = arith.mulf %252, %256 : vector<1x16x16xf32>
    %258 = arith.truncf %257 : vector<1x16x16xf32> to vector<1x16x16xbf16>
    %259 = vector.extract_strided_slice %224 {offsets = [0, 0, 8], sizes = [1, 16, 8], strides = [1, 1, 1]} : vector<1x16x32xbf16> to vector<1x16x8xbf16>
    "tpu.trace_start"() <{level = 10 : i32, message = "bqk,bkd->bqd"}> : () -> ()
    %cst_87 = arith.constant dense<0.000000e+00> : vector<1x16x8xf32>
    %260 = tpu.matmul %258, %259, %cst_87 {dimension_numbers = #tpu.dot_dimension_numbers<[2], [1], [1], [2], [0, 0, 0, 1, 1, 2], [0], [0]>} : vector<1x16x16xbf16>, vector<1x16x8xbf16>, vector<1x16x8xf32> -> vector<1x16x8xf32>
    "tpu.trace_stop"() : () -> ()
    %261 = vector.extract_strided_slice %220 {offsets = [0, 0, 16], sizes = [1, 16, 8], strides = [1, 1, 1]} : vector<1x16x32xbf16> to vector<1x16x8xbf16>
    %262 = vector.extract_strided_slice %222 {offsets = [0, 0, 16], sizes = [1, 16, 8], strides = [1, 1, 1]} : vector<1x16x32xbf16> to vector<1x16x8xbf16>
    "tpu.trace_start"() <{level = 10 : i32, message = "bqd,bkd->bqk"}> : () -> ()
    %cst_88 = arith.constant dense<0.000000e+00> : vector<1x16x16xf32>
    %263 = tpu.matmul %261, %262, %cst_88 {dimension_numbers = #tpu.dot_dimension_numbers<[2], [2], [1], [1], [0, 0, 0, 1, 1, 1], [0], [0]>} : vector<1x16x8xbf16>, vector<1x16x8xbf16>, vector<1x16x16xf32> -> vector<1x16x16xf32>
    %cst_89 = arith.constant -1.000000e+30 : f32
    "tpu.trace_stop"() : () -> ()
    %264 = vector.broadcast %cst_89 : f32 to vector<1x16x16xf32>
    %265 = arith.select %9, %263, %264 : vector<1x16x16xi1>, vector<1x16x16xf32>
    %cst_90 = arith.constant dense<0xFF800000> : vector<1x16xf32>
    %266 = vector.multi_reduction <maximumf>, %265, %cst_90 [2] : vector<1x16x16xf32> to vector<1x16xf32>
    %267 = vector.shape_cast %266 : vector<1x16xf32> to vector<1x16x1xf32>
    %268 = vector.broadcast %267 : vector<1x16x1xf32> to vector<1x16x16xf32>
    %269 = arith.subf %265, %268 : vector<1x16x16xf32>
    %270 = math.exp %269 : vector<1x16x16xf32>
    %cst_91 = arith.constant dense<0.000000e+00> : vector<1x16xf32>
    %271 = vector.multi_reduction <add>, %270, %cst_91 [2] : vector<1x16x16xf32> to vector<1x16xf32>
    %272 = vector.shape_cast %271 : vector<1x16xf32> to vector<1x16x1xf32>
    %273 = tpu.reciprocal %272 {approx = true} : vector<1x16x1xf32> -> vector<1x16x1xf32>
    %274 = vector.broadcast %273 : vector<1x16x1xf32> to vector<1x16x16xf32>
    %275 = arith.mulf %270, %274 : vector<1x16x16xf32>
    %276 = arith.truncf %275 : vector<1x16x16xf32> to vector<1x16x16xbf16>
    %277 = vector.extract_strided_slice %224 {offsets = [0, 0, 16], sizes = [1, 16, 8], strides = [1, 1, 1]} : vector<1x16x32xbf16> to vector<1x16x8xbf16>
    "tpu.trace_start"() <{level = 10 : i32, message = "bqk,bkd->bqd"}> : () -> ()
    %cst_92 = arith.constant dense<0.000000e+00> : vector<1x16x8xf32>
    %278 = tpu.matmul %276, %277, %cst_92 {dimension_numbers = #tpu.dot_dimension_numbers<[2], [1], [1], [2], [0, 0, 0, 1, 1, 2], [0], [0]>} : vector<1x16x16xbf16>, vector<1x16x8xbf16>, vector<1x16x8xf32> -> vector<1x16x8xf32>
    "tpu.trace_stop"() : () -> ()
    %279 = vector.extract_strided_slice %220 {offsets = [0, 0, 24], sizes = [1, 16, 8], strides = [1, 1, 1]} : vector<1x16x32xbf16> to vector<1x16x8xbf16>
    %280 = vector.extract_strided_slice %222 {offsets = [0, 0, 24], sizes = [1, 16, 8], strides = [1, 1, 1]} : vector<1x16x32xbf16> to vector<1x16x8xbf16>
    "tpu.trace_start"() <{level = 10 : i32, message = "bqd,bkd->bqk"}> : () -> ()
    %cst_93 = arith.constant dense<0.000000e+00> : vector<1x16x16xf32>
    %281 = tpu.matmul %279, %280, %cst_93 {dimension_numbers = #tpu.dot_dimension_numbers<[2], [2], [1], [1], [0, 0, 0, 1, 1, 1], [0], [0]>} : vector<1x16x8xbf16>, vector<1x16x8xbf16>, vector<1x16x16xf32> -> vector<1x16x16xf32>
    %cst_94 = arith.constant -1.000000e+30 : f32
    "tpu.trace_stop"() : () -> ()
    %282 = vector.broadcast %cst_94 : f32 to vector<1x16x16xf32>
    %283 = arith.select %9, %281, %282 : vector<1x16x16xi1>, vector<1x16x16xf32>
    %cst_95 = arith.constant dense<0xFF800000> : vector<1x16xf32>
    %284 = vector.multi_reduction <maximumf>, %283, %cst_95 [2] : vector<1x16x16xf32> to vector<1x16xf32>
    %285 = vector.shape_cast %284 : vector<1x16xf32> to vector<1x16x1xf32>
    %286 = vector.broadcast %285 : vector<1x16x1xf32> to vector<1x16x16xf32>
    %287 = arith.subf %283, %286 : vector<1x16x16xf32>
    %288 = math.exp %287 : vector<1x16x16xf32>
    %cst_96 = arith.constant dense<0.000000e+00> : vector<1x16xf32>
    %289 = vector.multi_reduction <add>, %288, %cst_96 [2] : vector<1x16x16xf32> to vector<1x16xf32>
    %290 = vector.shape_cast %289 : vector<1x16xf32> to vector<1x16x1xf32>
    %291 = tpu.reciprocal %290 {approx = true} : vector<1x16x1xf32> -> vector<1x16x1xf32>
    %292 = vector.broadcast %291 : vector<1x16x1xf32> to vector<1x16x16xf32>
    %293 = arith.mulf %288, %292 : vector<1x16x16xf32>
    %294 = arith.truncf %293 : vector<1x16x16xf32> to vector<1x16x16xbf16>
    %295 = vector.extract_strided_slice %224 {offsets = [0, 0, 24], sizes = [1, 16, 8], strides = [1, 1, 1]} : vector<1x16x32xbf16> to vector<1x16x8xbf16>
    "tpu.trace_start"() <{level = 10 : i32, message = "bqk,bkd->bqd"}> : () -> ()
    %cst_97 = arith.constant dense<0.000000e+00> : vector<1x16x8xf32>
    %296 = tpu.matmul %294, %295, %cst_97 {dimension_numbers = #tpu.dot_dimension_numbers<[2], [1], [1], [2], [0, 0, 0, 1, 1, 2], [0], [0]>} : vector<1x16x16xbf16>, vector<1x16x8xbf16>, vector<1x16x8xf32> -> vector<1x16x8xf32>
    "tpu.trace_stop"() : () -> ()
    %297 = tpu.concatenate %242, %260, %278, %296 in 2 : vector<1x16x8xf32>, vector<1x16x8xf32>, vector<1x16x8xf32>, vector<1x16x8xf32> -> vector<1x16x32xf32>
    %298 = vector.shape_cast %297 : vector<1x16x32xf32> to vector<16x32xf32>
    %299 = arith.truncf %298 : vector<16x32xf32> to vector<16x32xbf16>
    %c1_98 = arith.constant 1 : index
    %c0_99 = arith.constant 0 : index
    %c0_100 = arith.constant 0 : index
    %300 = vector.load %arg7[%c1_98, %c0_99, %c0_100] : memref<2x32x32xbf16, #tpu.memory_space<vmem>>, vector<1x32x32xbf16>
    %301 = vector.shape_cast %300 : vector<1x32x32xbf16> to vector<32x32xbf16>
    %cst_101 = arith.constant dense<0.000000e+00> : vector<16x32xf32>
    %302 = tpu.matmul %299, %301, %cst_101 {dimension_numbers = #tpu.dot_dimension_numbers<[1], [0], [0], [1], [0, 0, 1, 1], [], []>} : vector<16x32xbf16>, vector<32x32xbf16>, vector<16x32xf32> -> vector<16x32xf32>
    %303 = vector.broadcast %186 : vector<1x32xf32> to vector<16x32xf32>
    %304 = arith.addf %302, %303 : vector<16x32xf32>
    %305 = arith.addf %181, %304 : vector<16x32xf32>
    %cst_102 = arith.constant dense<0.000000e+00> : vector<16xf32>
    %306 = vector.multi_reduction <add>, %305, %cst_102 [1] : vector<16x32xf32> to vector<16xf32>
    %307 = vector.shape_cast %306 : vector<16xf32> to vector<16x1xf32>
    %cst_103 = arith.constant 3.200000e+01 : f32
    %308 = vector.broadcast %cst_103 : f32 to vector<16x1xf32>
    %309 = arith.divf %307, %308 : vector<16x1xf32>
    %310 = vector.broadcast %309 : vector<16x1xf32> to vector<16x32xf32>
    %311 = arith.subf %305, %310 : vector<16x32xf32>
    %312 = arith.mulf %311, %311 : vector<16x32xf32>
    %cst_104 = arith.constant dense<0.000000e+00> : vector<16xf32>
    %313 = vector.multi_reduction <add>, %312, %cst_104 [1] : vector<16x32xf32> to vector<16xf32>
    %314 = vector.shape_cast %313 : vector<16xf32> to vector<16x1xf32>
    %cst_105 = arith.constant 3.200000e+01 : f32
    %315 = vector.broadcast %cst_105 : f32 to vector<16x1xf32>
    %316 = arith.divf %314, %315 : vector<16x1xf32>
    %cst_106 = arith.constant 9.99999974E-6 : f32
    %317 = vector.broadcast %cst_106 : f32 to vector<16x1xf32>
    %318 = arith.addf %316, %317 : vector<16x1xf32>
    %319 = math.rsqrt %318 : vector<16x1xf32>
    %320 = vector.broadcast %319 : vector<16x1xf32> to vector<16x32xf32>
    %321 = arith.mulf %311, %320 : vector<16x32xf32>
    %322 = vector.broadcast %187 : vector<1x32xf32> to vector<16x32xf32>
    %323 = arith.mulf %321, %322 : vector<16x32xf32>
    %324 = vector.broadcast %188 : vector<1x32xf32> to vector<16x32xf32>
    %325 = arith.addf %323, %324 : vector<16x32xf32>
    %326 = arith.truncf %325 : vector<16x32xf32> to vector<16x32xbf16>
    %c1_107 = arith.constant 1 : index
    %c0_108 = arith.constant 0 : index
    %c0_109 = arith.constant 0 : index
    %327 = vector.load %arg8[%c1_107, %c0_108, %c0_109] : memref<2x32x128xbf16, #tpu.memory_space<vmem>>, vector<1x32x128xbf16>
    %328 = vector.shape_cast %327 : vector<1x32x128xbf16> to vector<32x128xbf16>
    %cst_110 = arith.constant dense<0.000000e+00> : vector<16x128xf32>
    %329 = tpu.matmul %326, %328, %cst_110 {dimension_numbers = #tpu.dot_dimension_numbers<[1], [0], [0], [1], [0, 0, 1, 1], [], []>} : vector<16x32xbf16>, vector<32x128xbf16>, vector<16x128xf32> -> vector<16x128xf32>
    %c1_111 = arith.constant 1 : index
    %c0_112 = arith.constant 0 : index
    %c0_113 = arith.constant 0 : index
    %330 = vector.load %arg9[%c1_111, %c0_112, %c0_113] : memref<2x1x128xf32, #tpu.memory_space<vmem>>, vector<1x1x128xf32>
    %331 = vector.shape_cast %330 : vector<1x1x128xf32> to vector<1x128xf32>
    %332 = vector.broadcast %331 : vector<1x128xf32> to vector<16x128xf32>
    %333 = arith.addf %329, %332 : vector<16x128xf32>
    %cst_114 = arith.constant 5.000000e-01 : f32
    %334 = vector.broadcast %cst_114 : f32 to vector<16x128xf32>
    %335 = arith.mulf %334, %333 : vector<16x128xf32>
    %cst_115 = arith.constant 4.471500e-02 : f32
    %336 = vector.broadcast %cst_115 : f32 to vector<16x128xf32>
    %337 = arith.mulf %336, %333 : vector<16x128xf32>
    %338 = arith.mulf %337, %333 : vector<16x128xf32>
    %339 = arith.mulf %338, %333 : vector<16x128xf32>
    %340 = arith.addf %333, %339 : vector<16x128xf32>
    %cst_116 = arith.constant 0.797884583 : f32
    %341 = vector.broadcast %cst_116 : f32 to vector<16x128xf32>
    %342 = arith.mulf %341, %340 : vector<16x128xf32>
    %343 = math.tanh %342 : vector<16x128xf32>
    %cst_117 = arith.constant 1.000000e+00 : f32
    %344 = vector.broadcast %cst_117 : f32 to vector<16x128xf32>
    %345 = arith.addf %344, %343 : vector<16x128xf32>
    %346 = arith.mulf %335, %345 : vector<16x128xf32>
    %347 = arith.truncf %346 : vector<16x128xf32> to vector<16x128xbf16>
    %c1_118 = arith.constant 1 : index
    %c0_119 = arith.constant 0 : index
    %c0_120 = arith.constant 0 : index
    %348 = vector.load %arg10[%c1_118, %c0_119, %c0_120] : memref<2x128x32xbf16, #tpu.memory_space<vmem>>, vector<1x128x32xbf16>
    %349 = vector.shape_cast %348 : vector<1x128x32xbf16> to vector<128x32xbf16>
    %cst_121 = arith.constant dense<0.000000e+00> : vector<16x32xf32>
    %350 = tpu.matmul %347, %349, %cst_121 {dimension_numbers = #tpu.dot_dimension_numbers<[1], [0], [0], [1], [0, 0, 1, 1], [], []>} : vector<16x128xbf16>, vector<128x32xbf16>, vector<16x32xf32> -> vector<16x32xf32>
    %351 = vector.broadcast %189 : vector<1x32xf32> to vector<16x32xf32>
    %352 = arith.addf %350, %351 : vector<16x32xf32>
    %353 = arith.addf %305, %352 : vector<16x32xf32>
    %354 = vector.shape_cast %353 : vector<16x32xf32> to vector<1x16x32xf32>
    %355 = vector.extract_strided_slice %354 {offsets = [0, 8, 0], sizes = [1, 1, 32], strides = [1, 1, 1]} : vector<1x16x32xf32> to vector<1x1x32xf32>
    %356 = vector.shape_cast %355 : vector<1x1x32xf32> to vector<1x32xf32>
    %357 = arith.truncf %356 : vector<1x32xf32> to vector<1x32xbf16>
    %c0_122 = arith.constant 0 : index
    %c0_123 = arith.constant 0 : index
    %358 = vector.load %arg11[%c0_122, %c0_123] : memref<32x4xbf16, #tpu.memory_space<vmem>>, vector<32x4xbf16>
    %cst_124 = arith.constant dense<0.000000e+00> : vector<1x4xf32>
    %359 = tpu.matmul %357, %358, %cst_124 {dimension_numbers = #tpu.dot_dimension_numbers<[1], [0], [0], [1], [0, 0, 1, 1], [], []>} : vector<1x32xbf16>, vector<32x4xbf16>, vector<1x4xf32> -> vector<1x4xf32>
    %c0_125 = arith.constant 0 : index
    %c0_126 = arith.constant 0 : index
    %360 = vector.load %arg12[%c0_125, %c0_126] : memref<1x4xf32, #tpu.memory_space<vmem>>, vector<1x4xf32>
    %361 = arith.addf %359, %360 : vector<1x4xf32>
    %c0_127 = arith.constant 0 : index
    %c0_128 = arith.constant 0 : index
    %c0_129 = arith.constant 0 : index
    %362 = vector.load %arg13[%c0_127, %c0_128, %c0_129] : memref<1x1x4xf32, #tpu.memory_space<vmem>>, vector<1x1x4xf32>
    %363 = vector.shape_cast %362 : vector<1x1x4xf32> to vector<1x4xf32>
    %364 = vector.shape_cast %361 : vector<1x4xf32> to vector<1x1x4xf32>
    tpu.vector_store %arg13[%c0_127, %c0_128, %c0_129], %364 {strides = array<i32>} : memref<1x1x4xf32, #tpu.memory_space<vmem>>, vector<1x1x4xf32>,
    return
  }
  func.func @transform_0(%arg0: i32) -> (i32, i32) {
    %c0_i32 = arith.constant 0 : i32
    %c0_i32_0 = arith.constant 0 : i32
    return %arg0, %c0_i32 : i32, i32
  }
  func.func @transform_1(%arg0: i32) -> (i32, i32) {
    %c0_i32 = arith.constant 0 : i32
    %c0_i32_0 = arith.constant 0 : i32
    %c0_i32_1 = arith.constant 0 : i32
    return %c0_i32, %c0_i32_0 : i32, i32
  }
  func.func @transform_2(%arg0: i32) -> (i32, i32) {
    %c0_i32 = arith.constant 0 : i32
    %c0_i32_0 = arith.constant 0 : i32
    %c0_i32_1 = arith.constant 0 : i32
    return %c0_i32, %c0_i32_0 : i32, i32
  }
  func.func @transform_3(%arg0: i32) -> (i32, i32, i32) {
    %c0_i32 = arith.constant 0 : i32
    %c0_i32_0 = arith.constant 0 : i32
    %c0_i32_1 = arith.constant 0 : i32
    %c0_i32_2 = arith.constant 0 : i32
    return %c0_i32, %c0_i32_0, %c0_i32_1 : i32, i32, i32
  }
  func.func @transform_4(%arg0: i32) -> (i32, i32, i32) {
    %c0_i32 = arith.constant 0 : i32
    %c0_i32_0 = arith.constant 0 : i32
    %c0_i32_1 = arith.constant 0 : i32
    %c0_i32_2 = arith.constant 0 : i32
    return %c0_i32, %c0_i32_0, %c0_i32_1 : i32, i32, i32
  }
  func.func @transform_5(%arg0: i32) -> (i32, i32, i32) {
    %c0_i32 = arith.constant 0 : i32
    %c0_i32_0 = arith.constant 0 : i32
    %c0_i32_1 = arith.constant 0 : i32
    %c0_i32_2 = arith.constant 0 : i32
    return %c0_i32, %c0_i32_0, %c0_i32_1 : i32, i32, i32
  }
  func.func @transform_6(%arg0: i32) -> (i32, i32, i32) {
    %c0_i32 = arith.constant 0 : i32
    %c0_i32_0 = arith.constant 0 : i32
    %c0_i32_1 = arith.constant 0 : i32
    %c0_i32_2 = arith.constant 0 : i32
    return %c0_i32, %c0_i32_0, %c0_i32_1 : i32, i32, i32
  }
  func.func @transform_7(%arg0: i32) -> (i32, i32, i32) {
    %c0_i32 = arith.constant 0 : i32
    %c0_i32_0 = arith.constant 0 : i32
    %c0_i32_1 = arith.constant 0 : i32
    %c0_i32_2 = arith.constant 0 : i32
    return %c0_i32, %c0_i32_0, %c0_i32_1 : i32, i32, i32
  }
  func.func @transform_8(%arg0: i32) -> (i32, i32, i32) {
    %c0_i32 = arith.constant 0 : i32
    %c0_i32_0 = arith.constant 0 : i32
    %c0_i32_1 = arith.constant 0 : i32
    %c0_i32_2 = arith.constant 0 : i32
    return %c0_i32, %c0_i32_0, %c0_i32_1 : i32, i32, i32
  }
  func.func @transform_9(%arg0: i32) -> (i32, i32, i32) {
    %c0_i32 = arith.constant 0 : i32
    %c0_i32_0 = arith.constant 0 : i32
    %c0_i32_1 = arith.constant 0 : i32
    %c0_i32_2 = arith.constant 0 : i32
    return %c0_i32, %c0_i32_0, %c0_i32_1 : i32, i32, i32
  }
  func.func @transform_10(%arg0: i32) -> (i32, i32) {
    %c0_i32 = arith.constant 0 : i32
    %c0_i32_0 = arith.constant 0 : i32
    %c0_i32_1 = arith.constant 0 : i32
    return %c0_i32, %c0_i32_0 : i32, i32
  }
  func.func @transform_11(%arg0: i32) -> (i32, i32) {
    %c0_i32 = arith.constant 0 : i32
    %c0_i32_0 = arith.constant 0 : i32
    %c0_i32_1 = arith.constant 0 : i32
    return %c0_i32, %c0_i32_0 : i32, i32
  }
  func.func @transform_12(%arg0: i32) -> (i32, i32, i32) {
    %c0_i32 = arith.constant 0 : i32
    %c0_i32_0 = arith.constant 0 : i32
    %c0_i32_1 = arith.constant 0 : i32
    return %arg0, %c0_i32, %c0_i32_0 : i32, i32, i32
  }
}

</mosaic_0001>

<llo_original>
// kernel: dpt_forward.1
$region0: #{dpt_forward.1}
  #allocation0 [shape = 'u32[]', space=smem, size = 0x4, offset = 0x4, fixed_abs, tag = 'smem constant byte address 0x4 - core index']
  #allocation1 [shape = 'u32[72,128]{1,0:T(1,128)}', space=vmem, size = 0x9000, scoped, tag = 'internal scratch']
  %s0 = inlined_call_operand.vmem [shape: f32[32,16], index: 0, kind: input, shape index: {}]
  %s1 = inlined_call_operand.vmem [shape: bf16[16,32], index: 1, kind: input, shape index: {}]
  %s2 = inlined_call_operand.vmem [shape: f32[1,32], index: 2, kind: input, shape index: {}]
  %s3 = inlined_call_operand.vmem [shape: f32[2,6,32], index: 3, kind: input, shape index: {}]
  %s4 = inlined_call_operand.vmem [shape: bf16[2,32,96], index: 4, kind: input, shape index: {}]
  %s5 = inlined_call_operand.vmem [shape: f32[2,1,96], index: 5, kind: input, shape index: {}]
  %s6 = inlined_call_operand.vmem [shape: bf16[2,32,32], index: 6, kind: input, shape index: {}]
  %s7 = inlined_call_operand.vmem [shape: bf16[2,32,128], index: 7, kind: input, shape index: {}]
  %s8 = inlined_call_operand.vmem [shape: f32[2,1,128], index: 8, kind: input, shape index: {}]
  %s9 = inlined_call_operand.vmem [shape: bf16[2,128,32], index: 9, kind: input, shape index: {}]
  %s10 = inlined_call_operand.vmem [shape: bf16[32,4], index: 10, kind: input, shape index: {}]
  %s11 = inlined_call_operand.vmem [shape: f32[1,4], index: 11, kind: input, shape index: {}]
  %s12 = inlined_call_operand.hbm [shape: f32[2,1,4], index: 12, kind: output, shape index: {}]
  %s13 = sld [smem:[#allocation0]]
  $region81: #{dpt_forward.1} parent=0
    _
  %s15 = ssub.s32 1, %s13
  %s16 = scalar_select 0, %s15, %s13
  $region1: #{dpt_forward.1} parent=0
    #allocation2 [shape = 'u8[1024]{0}', space=vmem, size = 0x400, scoped, tag = 'output window, operand 0']
    #allocation3 [shape = 's32[2]{0}', space=sflag, size = 0x8, scoped, tag = 'scoped memory for dpt_forward.1']
    %17 = vsyncpa [#allocation3], 0
    %s18 = scalar_lea.sflag [#allocation3], 1
    %19 = vsyncpa %s18, 0
    loop: start=0, step=1, limit=4
    $region2: #{dpt_forward.1} parent=1 // loop_pre_header
      _
    $region3: #{dpt_forward.1} parent=1 // loop_header
      %s21 = sphi 0, %s25
      %p22 = scmp.ge.s32.totalorder %s21, 4
      %s31 = sphi 0, %s33
      %s34 = sphi 0, %s31
      %s35 = sphi 0, %s34
      %s51 = sphi 0, %s35
      %s55 = sphi 0, %s55
      %s57 = sphi 0, %s55
      %s58 = sphi 0, %s57
      %s72 = sphi 0, %s58
      %s76 = sphi 0, %s76
      %s78 = sphi 0, %s76
      %s79 = sphi 0, %s78
      %s93 = sphi 0, %s79
      %s97 = sphi 0, %s97
      %s99 = sphi 0, %s97
      %s100 = sphi 0, %s99
      %s114 = sphi 0, %s100
      %s118 = sphi 0, %s118
      %s120 = sphi 0, %s118
      %s121 = sphi 0, %s120
      %s135 = sphi 0, %s121
      %s139 = sphi 0, %s139
      %s141 = sphi 0, %s139
      %s142 = sphi 0, %s141
      %s156 = sphi 0, %s142
      %s160 = sphi 0, %s160
      %s162 = sphi 0, %s160
      %s163 = sphi 0, %s162
      %s177 = sphi 0, %s163
      %s181 = sphi 0, %s181
      %s183 = sphi 0, %s181
      %s184 = sphi 0, %s183
      %s198 = sphi 0, %s184
      %s202 = sphi 0, %s202
      %s204 = sphi 0, %s202
      %s205 = sphi 0, %s204
      %s219 = sphi 0, %s205
      %s223 = sphi 0, %s223
      %s225 = sphi 0, %s223
      %s226 = sphi 0, %s225
      %s240 = sphi 0, %s226
      %s244 = sphi 0, %s244
      %s246 = sphi 0, %s244
      %s247 = sphi 0, %s246
      %s261 = sphi 0, %s247
      %s265 = sphi 0, %s265
      %s267 = sphi 0, %s265
      %s268 = sphi 0, %s267
      %s282 = sphi 0, %s268
      %s288 = sphi 0, %s290
      %s291 = sphi 0, %s288
      %s292 = sphi 0, %s291
      %s308 = sphi 0, %s292
    $region4: #{dpt_forward.1} parent=1 // loop_header_branch
      %24 = sbr.rel (%p22) target = $region8
    $region5: #{dpt_forward.1} parent=1 // loop_body
      %s26 = ssub.s32 %s21, 1
      %s27 = ssub.s32 %s21, 2
      %s28 = sadd.s32 %s21, 1
      %s29 = ssub.s32 %s21, %s28
      %p30 = scmp.eq.s32.totalorder %s29, 0
      %s32 = sadd.s32 %s31, 1
      %s33 = scalar_select %p30, %s31, %s32
      %p36 = pneg %p30
      %p37 = scmp.eq.s32.totalorder %s21, 1
      %p38 = por %p36, %p37
      %p39 = scmp.ne.s32.totalorder %s31, %s34
      %p40 = scmp.eq.s32.totalorder %s21, 0
      %p41 = por %p39, %p40
      %p42 = scmp.ne.s32.totalorder %s31, %s34
      %p43 = scmp.eq.s32.totalorder %s26, 1
      %p44 = por %p42, %p43
      %p45 = scmp.ne.s32.totalorder %s34, %s35
      %p46 = scmp.eq.s32.totalorder %s26, 0
      %p47 = por %p45, %p46
      %p48 = scmp.ne.s32.totalorder %s34, %s35
      %p49 = scmp.eq.s32.totalorder %s27, 1
      %p50 = por %p48, %p49
      %p52 = scmp.ne.s32.totalorder %s35, %s51
      %p53 = scmp.eq.s32.totalorder %s27, 0
      %p54 = por %p52, %p53
      %s56 = sadd.s32 %s55, 1
      %p59 = scmp.eq.s32.totalorder %s21, 1
      %p60 = scmp.ne.s32.totalorder %s55, %s57
      %p61 = scmp.eq.s32.totalorder %s21, 0
      %p62 = por %p60, %p61
      %p63 = scmp.ne.s32.totalorder %s55, %s57
      %p64 = scmp.eq.s32.totalorder %s26, 1
      %p65 = por %p63, %p64
      %p66 = scmp.ne.s32.totalorder %s57, %s58
      %p67 = scmp.eq.s32.totalorder %s26, 0
      %p68 = por %p66, %p67
      %p69 = scmp.ne.s32.totalorder %s57, %s58
      %p70 = scmp.eq.s32.totalorder %s27, 1
      %p71 = por %p69, %p70
      %p73 = scmp.ne.s32.totalorder %s58, %s72
      %p74 = scmp.eq.s32.totalorder %s27, 0
      %p75 = por %p73, %p74
      %s77 = sadd.s32 %s76, 1
      %p80 = scmp.eq.s32.totalorder %s21, 1
      %p81 = scmp.ne.s32.totalorder %s76, %s78
      %p82 = scmp.eq.s32.totalorder %s21, 0
      %p83 = por %p81, %p82
      %p84 = scmp.ne.s32.totalorder %s76, %s78
      %p85 = scmp.eq.s32.totalorder %s26, 1
      %p86 = por %p84, %p85
      %p87 = scmp.ne.s32.totalorder %s78, %s79
      %p88 = scmp.eq.s32.totalorder %s26, 0
      %p89 = por %p87, %p88
      %p90 = scmp.ne.s32.totalorder %s78, %s79
      %p91 = scmp.eq.s32.totalorder %s27, 1
      %p92 = por %p90, %p91
      %p94 = scmp.ne.s32.totalorder %s79, %s93
      %p95 = scmp.eq.s32.totalorder %s27, 0
      %p96 = por %p94, %p95
      %s98 = sadd.s32 %s97, 1
      %p101 = scmp.eq.s32.totalorder %s21, 1
      %p102 = scmp.ne.s32.totalorder %s97, %s99
      %p103 = scmp.eq.s32.totalorder %s21, 0
      %p104 = por %p102, %p103
      %p105 = scmp.ne.s32.totalorder %s97, %s99
      %p106 = scmp.eq.s32.totalorder %s26, 1
      %p107 = por %p105, %p106
      %p108 = scmp.ne.s32.totalorder %s99, %s100
      %p109 = scmp.eq.s32.totalorder %s26, 0
      %p110 = por %p108, %p109
      %p111 = scmp.ne.s32.totalorder %s99, %s100
      %p112 = scmp.eq.s32.totalorder %s27, 1
      %p113 = por %p111, %p112
      %p115 = scmp.ne.s32.totalorder %s100, %s114
      %p116 = scmp.eq.s32.totalorder %s27, 0
      %p117 = por %p115, %p116
      %s119 = sadd.s32 %s118, 1
      %p122 = scmp.eq.s32.totalorder %s21, 1
      %p123 = scmp.ne.s32.totalorder %s118, %s120
      %p124 = scmp.eq.s32.totalorder %s21, 0
      %p125 = por %p123, %p124
      %p126 = scmp.ne.s32.totalorder %s118, %s120
      %p127 = scmp.eq.s32.totalorder %s26, 1
      %p128 = por %p126, %p127
      %p129 = scmp.ne.s32.totalorder %s120, %s121
      %p130 = scmp.eq.s32.totalorder %s26, 0
      %p131 = por %p129, %p130
      %p132 = scmp.ne.s32.totalorder %s120, %s121
      %p133 = scmp.eq.s32.totalorder %s27, 1
      %p134 = por %p132, %p133
      %p136 = scmp.ne.s32.totalorder %s121, %s135
      %p137 = scmp.eq.s32.totalorder %s27, 0
      %p138 = por %p136, %p137
      %s140 = sadd.s32 %s139, 1
      %p143 = scmp.eq.s32.totalorder %s21, 1
      %p144 = scmp.ne.s32.totalorder %s139, %s141
      %p145 = scmp.eq.s32.totalorder %s21, 0
      %p146 = por %p144, %p145
      %p147 = scmp.ne.s32.totalorder %s139, %s141
      %p148 = scmp.eq.s32.totalorder %s26, 1
      %p149 = por %p147, %p148
      %p150 = scmp.ne.s32.totalorder %s141, %s142
      %p151 = scmp.eq.s32.totalorder %s26, 0
      %p152 = por %p150, %p151
      %p153 = scmp.ne.s32.totalorder %s141, %s142
      %p154 = scmp.eq.s32.totalorder %s27, 1
      %p155 = por %p153, %p154
      %p157 = scmp.ne.s32.totalorder %s142, %s156
      %p158 = scmp.eq.s32.totalorder %s27, 0
      %p159 = por %p157, %p158
      %s161 = sadd.s32 %s160, 1
      %p164 = scmp.eq.s32.totalorder %s21, 1
      %p165 = scmp.ne.s32.totalorder %s160, %s162
      %p166 = scmp.eq.s32.totalorder %s21, 0
      %p167 = por %p165, %p166
      %p168 = scmp.ne.s32.totalorder %s160, %s162
      %p169 = scmp.eq.s32.totalorder %s26, 1
      %p170 = por %p168, %p169
      %p171 = scmp.ne.s32.totalorder %s162, %s163
      %p172 = scmp.eq.s32.totalorder %s26, 0
      %p173 = por %p171, %p172
      %p174 = scmp.ne.s32.totalorder %s162, %s163
      %p175 = scmp.eq.s32.totalorder %s27, 1
      %p176 = por %p174, %p175
      %p178 = scmp.ne.s32.totalorder %s163, %s177
      %p179 = scmp.eq.s32.totalorder %s27, 0
      %p180 = por %p178, %p179
      %s182 = sadd.s32 %s181, 1
      %p185 = scmp.eq.s32.totalorder %s21, 1
      %p186 = scmp.ne.s32.totalorder %s181, %s183
      %p187 = scmp.eq.s32.totalorder %s21, 0
      %p188 = por %p186, %p187
      %p189 = scmp.ne.s32.totalorder %s181, %s183
      %p190 = scmp.eq.s32.totalorder %s26, 1
      %p191 = por %p189, %p190
      %p192 = scmp.ne.s32.totalorder %s183, %s184
      %p193 = scmp.eq.s32.totalorder %s26, 0
      %p194 = por %p192, %p193
      %p195 = scmp.ne.s32.totalorder %s183, %s184
      %p196 = scmp.eq.s32.totalorder %s27, 1
      %p197 = por %p195, %p196
      %p199 = scmp.ne.s32.totalorder %s184, %s198
      %p200 = scmp.eq.s32.totalorder %s27, 0
      %p201 = por %p199, %p200
      %s203 = sadd.s32 %s202, 1
      %p206 = scmp.eq.s32.totalorder %s21, 1
      %p207 = scmp.ne.s32.totalorder %s202, %s204
      %p208 = scmp.eq.s32.totalorder %s21, 0
      %p209 = por %p207, %p208
      %p210 = scmp.ne.s32.totalorder %s202, %s204
      %p211 = scmp.eq.s32.totalorder %s26, 1
      %p212 = por %p210, %p211
      %p213 = scmp.ne.s32.totalorder %s204, %s205
      %p214 = scmp.eq.s32.totalorder %s26, 0
      %p215 = por %p213, %p214
      %p216 = scmp.ne.s32.totalorder %s204, %s205
      %p217 = scmp.eq.s32.totalorder %s27, 1
      %p218 = por %p216, %p217
      %p220 = scmp.ne.s32.totalorder %s205, %s219
      %p221 = scmp.eq.s32.totalorder %s27, 0
      %p222 = por %p220, %p221
      %s224 = sadd.s32 %s223, 1
      %p227 = scmp.eq.s32.totalorder %s21, 1
      %p228 = scmp.ne.s32.totalorder %s223, %s225
      %p229 = scmp.eq.s32.totalorder %s21, 0
      %p230 = por %p228, %p229
      %p231 = scmp.ne.s32.totalorder %s223, %s225
      %p232 = scmp.eq.s32.totalorder %s26, 1
      %p233 = por %p231, %p232
      %p234 = scmp.ne.s32.totalorder %s225, %s226
      %p235 = scmp.eq.s32.totalorder %s26, 0
      %p236 = por %p234, %p235
      %p237 = scmp.ne.s32.totalorder %s225, %s226
      %p238 = scmp.eq.s32.totalorder %s27, 1
      %p239 = por %p237, %p238
      %p241 = scmp.ne.s32.totalorder %s226, %s240
      %p242 = scmp.eq.s32.totalorder %s27, 0
      %p243 = por %p241, %p242
      %s245 = sadd.s32 %s244, 1
      %p248 = scmp.eq.s32.totalorder %s21, 1
      %p249 = scmp.ne.s32.totalorder %s244, %s246
      %p250 = scmp.eq.s32.totalorder %s21, 0
      %p251 = por %p249, %p250
      %p252 = scmp.ne.s32.totalorder %s244, %s246
      %p253 = scmp.eq.s32.totalorder %s26, 1
      %p254 = por %p252, %p253
      %p255 = scmp.ne.s32.totalorder %s246, %s247
      %p256 = scmp.eq.s32.totalorder %s26, 0
      %p257 = por %p255, %p256
      %p258 = scmp.ne.s32.totalorder %s246, %s247
      %p259 = scmp.eq.s32.totalorder %s27, 1
      %p260 = por %p258, %p259
      %p262 = scmp.ne.s32.totalorder %s247, %s261
      %p263 = scmp.eq.s32.totalorder %s27, 0
      %p264 = por %p262, %p263
      %s266 = sadd.s32 %s265, 1
      %p269 = scmp.eq.s32.totalorder %s21, 1
      %p270 = scmp.ne.s32.totalorder %s265, %s267
      %p271 = scmp.eq.s32.totalorder %s21, 0
      %p272 = por %p270, %p271
      %p273 = scmp.ne.s32.totalorder %s265, %s267
      %p274 = scmp.eq.s32.totalorder %s26, 1
      %p275 = por %p273, %p274
      %p276 = scmp.ne.s32.totalorder %s267, %s268
      %p277 = scmp.eq.s32.totalorder %s26, 0
      %p278 = por %p276, %p277
      %p279 = scmp.ne.s32.totalorder %s267, %s268
      %p280 = scmp.eq.s32.totalorder %s27, 1
      %p281 = por %p279, %p280
      %p283 = scmp.ne.s32.totalorder %s268, %s282
      %p284 = scmp.eq.s32.totalorder %s27, 0
      %p285 = por %p283, %p284
      %s286 = ssub.s32 %s21, %s28
      %p287 = scmp.eq.s32.totalorder %s286, 0
      %s289 = sadd.s32 %s288, 1
      %s290 = scalar_select %p287, %s288, %s289
      %p293 = pneg %p287
      %p294 = scmp.eq.s32.totalorder %s21, 1
      %p295 = por %p293, %p294
      %p296 = scmp.ne.s32.totalorder %s288, %s291
      %p297 = scmp.eq.s32.totalorder %s21, 0
      %p298 = por %p296, %p297
      %p299 = scmp.ne.s32.totalorder %s288, %s291
      %p300 = scmp.eq.s32.totalorder %s26, 1
      %p301 = por %p299, %p300
      %p302 = scmp.ne.s32.totalorder %s291, %s292
      %p303 = scmp.eq.s32.totalorder %s26, 0
      %p304 = por %p302, %p303
      %p305 = scmp.ne.s32.totalorder %s291, %s292
      %p306 = scmp.eq.s32.totalorder %s27, 1
      %p307 = por %p305, %p306
      %p309 = scmp.ne.s32.totalorder %s292, %s308
      %p310 = scmp.eq.s32.totalorder %s27, 0
      %p311 = por %p309, %p310
      %p312 = scmp.le.s32.totalorder 1, %s21
      %p313 = scmp.lt.s32.totalorder %s21, 3
      %p314 = pnand %p312, %p313
      %p315 = pneg %p314
      // Predicated region
      $region9: #{dpt_forward.1} parent=5 // pred_check
        _
      $region10: #{dpt_forward.1} parent=5 // pred_check_branch
        %317 = sbr.rel (%p314) target = $region12
      $region11: #{dpt_forward.1} parent=5 // pred_region
        %s318 = ssub.s32 %s21, 1
        // Predicated region
        $region13: #{dpt_forward.1} parent=11 // pred_check
          %p319 = pneg %p68
        $region14: #{dpt_forward.1} parent=11 // pred_check_branch
          %321 = sbr.rel (%p319) target = $region16
        $region15: #{dpt_forward.1} parent=11 // pred_region
          _
        $region16: #{dpt_forward.1} parent=11 // pred_fallthru
          _
        // Predicated region
        $region17: #{dpt_forward.1} parent=11 // pred_check
          %p322 = pneg %p89
        $region18: #{dpt_forward.1} parent=11 // pred_check_branch
          %324 = sbr.rel (%p322) target = $region20
        $region19: #{dpt_forward.1} parent=11 // pred_region
          _
        $region20: #{dpt_forward.1} parent=11 // pred_fallthru
          _
        // Predicated region
        $region21: #{dpt_forward.1} parent=11 // pred_check
          %p325 = pneg %p110
        $region22: #{dpt_forward.1} parent=11 // pred_check_branch
          %327 = sbr.rel (%p325) target = $region24
        $region23: #{dpt_forward.1} parent=11 // pred_region
          _
        $region24: #{dpt_forward.1} parent=11 // pred_fallthru
          _
        // Predicated region
        $region25: #{dpt_forward.1} parent=11 // pred_check
          %p328 = pneg %p131
        $region26: #{dpt_forward.1} parent=11 // pred_check_branch
          %330 = sbr.rel (%p328) target = $region28
        $region27: #{dpt_forward.1} parent=11 // pred_region
          _
        $region28: #{dpt_forward.1} parent=11 // pred_fallthru
          _
        // Predicated region
        $region29: #{dpt_forward.1} parent=11 // pred_check
          %p331 = pneg %p152
        $region30: #{dpt_forward.1} parent=11 // pred_check_branch
          %333 = sbr.rel (%p331) target = $region32
        $region31: #{dpt_forward.1} parent=11 // pred_region
          _
        $region32: #{dpt_forward.1} parent=11 // pred_fallthru
          _
        // Predicated region
        $region33: #{dpt_forward.1} parent=11 // pred_check
          %p334 = pneg %p173
        $region34: #{dpt_forward.1} parent=11 // pred_check_branch
          %336 = sbr.rel (%p334) target = $region36
        $region35: #{dpt_forward.1} parent=11 // pred_region
          _
        $region36: #{dpt_forward.1} parent=11 // pred_fallthru
          _
        // Predicated region
        $region37: #{dpt_forward.1} parent=11 // pred_check
          %p337 = pneg %p194
        $region38: #{dpt_forward.1} parent=11 // pred_check_branch
          %339 = sbr.rel (%p337) target = $region40
        $region39: #{dpt_forward.1} parent=11 // pred_region
          _
        $region40: #{dpt_forward.1} parent=11 // pred_fallthru
          _
        // Predicated region
        $region41: #{dpt_forward.1} parent=11 // pred_check
          %p340 = pneg %p215
        $region42: #{dpt_forward.1} parent=11 // pred_check_branch
          %342 = sbr.rel (%p340) target = $region44
        $region43: #{dpt_forward.1} parent=11 // pred_region
          _
        $region44: #{dpt_forward.1} parent=11 // pred_fallthru
          _
        // Predicated region
        $region45: #{dpt_forward.1} parent=11 // pred_check
          %p343 = pneg %p236
        $region46: #{dpt_forward.1} parent=11 // pred_check_branch
          %345 = sbr.rel (%p343) target = $region48
        $region47: #{dpt_forward.1} parent=11 // pred_region
          _
        $region48: #{dpt_forward.1} parent=11 // pred_fallthru
          _
        // Predicated region
        $region49: #{dpt_forward.1} parent=11 // pred_check
          %p346 = pneg %p257
        $region50: #{dpt_forward.1} parent=11 // pred_check_branch
          %348 = sbr.rel (%p346) target = $region52
        $region51: #{dpt_forward.1} parent=11 // pred_region
          _
        $region52: #{dpt_forward.1} parent=11 // pred_fallthru
          _
        // Predicated region
        $region53: #{dpt_forward.1} parent=11 // pred_check
          %p349 = pneg %p278
        $region54: #{dpt_forward.1} parent=11 // pred_check_branch
          %351 = sbr.rel (%p349) target = $region56
        $region55: #{dpt_forward.1} parent=11 // pred_region
          _
        $region56: #{dpt_forward.1} parent=11 // pred_fallthru
          _
      $region12: #{dpt_forward.1} parent=5 // pred_fallthru
        _
      %p352 = scmp.lt.s32.totalorder %s21, 2
      // Predicated region
      $region57: #{dpt_forward.1} parent=5 // pred_check
        %p353 = pneg %p352
      $region58: #{dpt_forward.1} parent=5 // pred_check_branch
        %355 = sbr.rel (%p353) target = $region60
      $region59: #{dpt_forward.1} parent=5 // pred_region
        // Predicated region
        $region61: #{dpt_forward.1} parent=59 // pred_check
          %p356 = pneg %p41
        $region62: #{dpt_forward.1} parent=59 // pred_check_branch
          %358 = sbr.rel (%p356) target = $region64
        $region63: #{dpt_forward.1} parent=59 // pred_region
          %s359 = smul.u32 2, %s21
          %p360 = scmp.lt.s32.totalorder %s359, 3
          %s361 = scalar_select %p360, %s359, 3
          %s362 = smul.addr %s361, 8
          %s363 = scalar_lea.vmem %s0, %s362
          %s364 = smul.u32 2, %s21
        $region64: #{dpt_forward.1} parent=59 // pred_fallthru
          _
      $region60: #{dpt_forward.1} parent=5 // pred_fallthru
        _
      %p365 = scmp.le.s32.totalorder 1, %s21
      %p366 = scmp.lt.s32.totalorder %s21, 3
      %p367 = pnand %p365, %p366
      %p368 = pneg %p367
      // Predicated region
      $region65: #{dpt_forward.1} parent=5 // pred_check
        _
      $region66: #{dpt_forward.1} parent=5 // pred_check_branch
        %370 = sbr.rel (%p367) target = $region68
      $region67: #{dpt_forward.1} parent=5 // pred_region
        %s371 = ssub.s32 %s21, 1
        %s372 = smul.u32 2, %s26
        %p373 = scmp.lt.s32.totalorder %s372, 3
        %s374 = scalar_select %p373, %s372, 3
        %s375 = smul.addr %s374, 8
        %s376 = scalar_lea.vmem %s0, %s375
        %p377 = pneg %p47
        %p378 = pneg %p44
        %p379 = pneg %p68
        %p380 = pneg %p65
        %p381 = pneg %p89
        %p382 = pneg %p86
        %p383 = pneg %p110
        %p384 = pneg %p107
        %p385 = pneg %p131
        %p386 = pneg %p128
        %p387 = pneg %p152
        %p388 = pneg %p149
        %p389 = pneg %p173
        %p390 = pneg %p170
        %p391 = pneg %p194
        %p392 = pneg %p191
        %p393 = pneg %p215
        %p394 = pneg %p212
        %p395 = pneg %p236
        %p396 = pneg %p233
        %p397 = pneg %p257
        %p398 = pneg %p254
        %p399 = pneg %p278
        %p400 = pneg %p275
        %p401 = pneg %p304
        %p402 = pneg %p301
        %s403 = sand.u32 %s291, 1
        %s404 = scalar_lea.sflag [#allocation3], %s403
        %s405 = sand.u32 %s291, 1
        %s406 = scalar_lea.vmem [#allocation2], %s405
        %s407 = smul.u32 2, %s26
        %p408 = scmp.lt.s32.totalorder %s407, 3
        %s409 = scalar_select %p408, %s407, 3
        %s410 = smul.addr %s409, 8
        %s411 = scalar_lea.vmem %s0, %s410
        %s412 = smul.u32 2, %s26
        %v414 = vld [vmem:[%s411] sm:$0xff]
        %v415 = vld [vmem:[%s411 + $0x8] sm:$0xff]
        %v416 = vpack.c.bf16 %v415, %v414
        %v417 = vld [vmem:[%s1] sm:$0xf]
        %v418 = vld [vmem:[%s1 + $0x4] sm:$0xf]
        %v419 = vld [vmem:[%s2] sm:$0x1]
        %v421 = vperm.slane %v419, 0
        %v425 = vunpack.c.l.b16 %v417
        %v426 = vunpack.c.l.b16 %v418
        %v427 = vpack.c.b16 %v426, %v425
        %vm429 = vcmask 130048
        %v431 = vsel %vm429, %v416, 0
        %433 = vmatpush.bf16.msra.mxu0 0
        %434 = vmatpush.bf16.msra.mxu0 0
        %435 = vmatpush.bf16.msra.mxu0 0
        %436 = vmatpush.bf16.msra.mxu0 0
        %437 = vmatpush.bf16.msra.mxu0 0
        %438 = vmatpush.bf16.msra.mxu0 0
        %439 = vmatpush.bf16.msra.mxu0 0
        %440 = vmatpush.bf16.msra.mxu0 %v427
        %441 = vmatmul.bf16.gmra.mxu0 %v431
        %v442 = vpop.f32.mrf.mxu0
        %v443 = vadd.f32 %v421, %v442
        %v444 = vpop.f32.mrf.mxu0
        %v445 = vadd.f32 %v421, %v444
        %446 = vdwg.mxu0
        %v447 = vlaneseq
        %v448 = vshrl.u32 %v447, 7
        %v449 = vadd.s32 %v448, 8
        %v450 = vlaneseq
        %v451 = vand.u32 %v450, 127
        %vm452 = vcmp.ge.s32.totalorder %v448, %v451
        %vm453 = vcmp.ge.s32.totalorder %v449, %v451
        %v454 = vld [vmem:[%s3] sm:$0x3f]
        %vm455 = vcmask 261120
        %v456 = vsel %vm455, %v443, 0.0
        %457 = vadd.xlane.f32.xlu0 %v456
        %v458 = vpop.xlane.xlu0 %457
        %v459 = vsel %vm455, %v445, 0.0
        %460 = vadd.xlane.f32.xlu0 %v459
        %v461 = vpop.xlane.xlu0 %460
        %v462 = vrcp.pop 32.0
        %v463 = vmul.f32 32.0, %v462
        %v464 = vsub.f32 1.0, %v463
        %v465 = vmul.f32 %v462, %v464
        %v466 = vadd.f32 %v462, %v465
        %vm467 = vweird.f32 %v462
        %v468 = vsel %vm467, %v462, %v466
        %v469 = vmul.f32 %v458, %v468
        %v470 = vmul.f32 %v461, %v468
        %v471 = vsub.f32 %v443, %v469
        %v472 = vsub.f32 %v445, %v470
        %v473 = vmul.f32 %v471, %v471
        %v474 = vmul.f32 %v472, %v472
        %v475 = vsel %vm455, %v473, 0.0
        %476 = vadd.xlane.f32.xlu0 %v475
        %v477 = vpop.xlane.xlu0 %476
        %v478 = vsel %vm455, %v474, 0.0
        %479 = vadd.xlane.f32.xlu0 %v478
        %v480 = vpop.xlane.xlu0 %479
        %v481 = vmul.f32 %v477, %v468
        %v482 = vmul.f32 %v480, %v468
        %v483 = vadd.f32 %v481, 1e-05
        %v484 = vadd.f32 %v482, 1e-05
        %v485 = vrsqrt.pop %v483
        %v486 = vmul.f32 %v485, %v483
        %v487 = vmul.f32 %v486, %v485
        %v488 = vmul.f32 0.5, %v487
        %v489 = vsub.f32 1.5, %v488
        %v490 = vmul.f32 %v485, %v489
        %vm491 = vweird.f32 %v483
        %vm492 = vweird.f32 %v485
        %vm493 = vmor %vm491, %vm492
        %v494 = vsel %vm493, %v485, %v490
        %v495 = vrsqrt.pop %v484
        %v496 = vmul.f32 %v495, %v484
        %v497 = vmul.f32 %v496, %v495
        %v498 = vmul.f32 0.5, %v497
        %v499 = vsub.f32 1.5, %v498
        %v500 = vmul.f32 %v495, %v499
        %vm501 = vweird.f32 %v484
        %vm502 = vweird.f32 %v495
        %vm503 = vmor %vm501, %vm502
        %v504 = vsel %vm503, %v495, %v500
        %v505 = vmul.f32 %v471, %v494
        %v506 = vmul.f32 %v472, %v504
        %v507 = vperm.slane %v454, 0
        %v508 = vmul.f32 %v505, %v507
        %v509 = vmul.f32 %v506, %v507
        %v510 = vperm.slane %v454, 1
        %v511 = vadd.f32 %v508, %v510
        %v512 = vadd.f32 %v509, %v510
        %v513 = vpack.c.bf16 %v512, %v511
        %v514 = vld [vmem:[%s4] sm:$0xf]
        %v515 = vld [vmem:[%s4 + $0x4] sm:$0xf]
        %v516 = vld [vmem:[%s4 + $0x8] sm:$0xf]
        %v517 = vld [vmem:[%s4 + $0xc] sm:$0xf]
        %v518 = vld [vmem:[%s5] sm:$0x1]
        %v520 = vperm.slane %v518, 0
        %v526 = vunpack.c.l.b16 %v514
        %v527 = vunpack.c.l.b16 %v515
        %v528 = vunpack.c.l.b16 %v516
        %v529 = vunpack.c.l.b16 %v517
        %v530 = vpack.c.b16 %v527, %v526
        %v531 = vpack.c.b16 %v529, %v528
        %v535 = vsel %vm455, %v513, 0
        %537 = vmatpush.bf16.msra.mxu0 0
        %538 = vmatpush.bf16.msra.mxu0 0
        %539 = vmatpush.bf16.msra.mxu0 0
        %540 = vmatpush.bf16.msra.mxu0 0
        %541 = vmatpush.bf16.msra.mxu0 0
        %542 = vmatpush.bf16.msra.mxu0 0
        %543 = vmatpush.bf16.msra.mxu0 %v531
        %544 = vmatpush.bf16.msra.mxu0 %v530
        %545 = vmatmul.bf16.gmra.mxu0 %v535
        %v546 = vpop.f32.mrf.mxu0
        %v547 = vadd.f32 %v520, %v546
        %v548 = vpop.f32.mrf.mxu0
        %v549 = vadd.f32 %v520, %v548
        %550 = vdwg.mxu0
        %v551 = vpack.c.bf16 %v547, %v547
        %v552 = vpack.c.bf16 %v549, %v549
        %v555 = vunpack.c.l.b16 %v551
        %v556 = vunpack.c.l.b16 %v552
        %v557 = vpack.c.b16 %v556, %v555
        %558 = vrot.lane.b32.xlu0 %v557, 96
        %v559 = vpop.permute.xlu0 %558
        %vm560 = vcmask 64512
        %v562 = vsel %vm560, %v557, 0
        %v565 = vsel %vm560, %v559, 0
        %567 = vmatpush.bf16.xpose.msra.mxu0 0
        %568 = vmatpush.bf16.xpose.msra.mxu0 0
        %569 = vmatpush.bf16.xpose.msra.mxu0 0
        %570 = vmatpush.bf16.xpose.msra.mxu0 0
        %571 = vmatpush.bf16.xpose.msra.mxu0 0
        %572 = vmatpush.bf16.xpose.msra.mxu0 0
        %573 = vmatpush.bf16.xpose.msra.mxu0 0
        %574 = vmatpush.bf16.xpose.msra.mxu0 %v565
        %575 = vmatmul.bf16.gmra.mxu0 %v562
        %v576 = vpop.f32.mrf.mxu0
        %v577 = vadd.f32 0.0, %v576
        %v578 = vpop.f32.mrf.mxu0
        %v579 = vadd.f32 0.0, %v578
        %580 = vdwg.mxu0
        %v581 = vsel %vm452, %v577, -1e+30
        %v582 = vsel %vm453, %v579, -1e+30
        %v583 = vsel %vm429, %v581, -inf
        %584 = vmax.xlane.f32.xlu0 %v583
        %v585 = vpop.xlane.xlu0 %584
        %v586 = vsel %vm429, %v582, -inf
        %587 = vmax.xlane.f32.xlu0 %v586
        %v588 = vpop.xlane.xlu0 %587
        %v589 = vsub.f32 %v581, %v585
        %v590 = vsub.f32 %v582, %v588
        %v591 = vmul.f32 %v589, 1.442695
        %v592 = vpow.pop %v591
        %v593 = vmul.f32 %v590, 1.442695
        %v594 = vpow.pop %v593
        %v595 = vsel %vm429, %v592, 0.0
        %596 = vadd.xlane.f32.xlu0 %v595
        %v597 = vpop.xlane.xlu0 %596
        %v598 = vsel %vm429, %v594, 0.0
        %599 = vadd.xlane.f32.xlu0 %v598
        %v600 = vpop.xlane.xlu0 %599
        %v601 = vrcp.pop %v597
        %v602 = vrcp.pop %v600
        %v603 = vmul.f32 %v592, %v601
        %v604 = vmul.f32 %v594, %v602
        %v605 = vpack.c.bf16 %v603, %v603
        %v606 = vpack.c.bf16 %v604, %v604
        %v609 = vunpack.c.l.b16 %v605
        %v610 = vunpack.c.l.b16 %v606
        %v611 = vpack.c.b16 %v610, %v609
        %612 = vrot.lane.b32.xlu0 %v557, 64
        %v613 = vpop.permute.xlu0 %612
        %v616 = vsel %vm429, %v611, 0
        %618 = vmatpush.bf16.msra.mxu0 0
        %619 = vmatpush.bf16.msra.mxu0 0
        %620 = vmatpush.bf16.msra.mxu0 0
        %621 = vmatpush.bf16.msra.mxu0 0
        %622 = vmatpush.bf16.msra.mxu0 0
        %623 = vmatpush.bf16.msra.mxu0 0
        %624 = vmatpush.bf16.msra.mxu0 0
        %625 = vmatpush.bf16.msra.mxu0 %v613
        %626 = vmatmul.bf16.gmra.mxu0 %v616
        %v627 = vpop.f32.mrf.mxu0
        %v628 = vadd.f32 0.0, %v627
        %v629 = vpop.f32.mrf.mxu0
        %v630 = vadd.f32 0.0, %v629
        %631 = vdwg.mxu0
        %632 = vrot.lane.b32.xlu0 %v557, 120
        %v633 = vpop.permute.xlu0 %632
        %634 = vrot.lane.b32.xlu0 %v557, 88
        %v635 = vpop.permute.xlu0 %634
        %v637 = vsel %vm560, %v633, 0
        %v640 = vsel %vm560, %v635, 0
        %642 = vmatpush.bf16.xpose.msra.mxu0 0
        %643 = vmatpush.bf16.xpose.msra.mxu0 0
        %644 = vmatpush.bf16.xpose.msra.mxu0 0
        %645 = vmatpush.bf16.xpose.msra.mxu0 0
        %646 = vmatpush.bf16.xpose.msra.mxu0 0
        %647 = vmatpush.bf16.xpose.msra.mxu0 0
        %648 = vmatpush.bf16.xpose.msra.mxu0 0
        %649 = vmatpush.bf16.xpose.msra.mxu0 %v640
        %650 = vmatmul.bf16.gmra.mxu0 %v637
        %v651 = vpop.f32.mrf.mxu0
        %v652 = vadd.f32 0.0, %v651
        %v653 = vpop.f32.mrf.mxu0
        %v654 = vadd.f32 0.0, %v653
        %655 = vdwg.mxu0
        %v656 = vsel %vm452, %v652, -1e+30
        %v657 = vsel %vm453, %v654, -1e+30
        %v658 = vsel %vm429, %v656, -inf
        %659 = vmax.xlane.f32.xlu0 %v658
        %v660 = vpop.xlane.xlu0 %659
        %v661 = vsel %vm429, %v657, -inf
        %662 = vmax.xlane.f32.xlu0 %v661
        %v663 = vpop.xlane.xlu0 %662
        %v664 = vsub.f32 %v656, %v660
        %v665 = vsub.f32 %v657, %v663
        %v666 = vmul.f32 %v664, 1.442695
        %v667 = vpow.pop %v666
        %v668 = vmul.f32 %v665, 1.442695
        %v669 = vpow.pop %v668
        %v670 = vsel %vm429, %v667, 0.0
        %671 = vadd.xlane.f32.xlu0 %v670
        %v672 = vpop.xlane.xlu0 %671
        %v673 = vsel %vm429, %v669, 0.0
        %674 = vadd.xlane.f32.xlu0 %v673
        %v675 = vpop.xlane.xlu0 %674
        %v676 = vrcp.pop %v672
        %v677 = vrcp.pop %v675
        %v678 = vmul.f32 %v667, %v676
        %v679 = vmul.f32 %v669, %v677
        %v680 = vpack.c.bf16 %v678, %v678
        %v681 = vpack.c.bf16 %v679, %v679
        %v684 = vunpack.c.l.b16 %v680
        %v685 = vunpack.c.l.b16 %v681
        %v686 = vpack.c.b16 %v685, %v684
        %687 = vrot.lane.b32.xlu0 %v557, 56
        %v688 = vpop.permute.xlu0 %687
        %v691 = vsel %vm429, %v686, 0
        %693 = vmatpush.bf16.msra.mxu0 0
        %694 = vmatpush.bf16.msra.mxu0 0
        %695 = vmatpush.bf16.msra.mxu0 0
        %696 = vmatpush.bf16.msra.mxu0 0
        %697 = vmatpush.bf16.msra.mxu0 0
        %698 = vmatpush.bf16.msra.mxu0 0
        %699 = vmatpush.bf16.msra.mxu0 0
        %700 = vmatpush.bf16.msra.mxu0 %v688
        %701 = vmatmul.bf16.gmra.mxu0 %v691
        %v702 = vpop.f32.mrf.mxu0
        %v703 = vadd.f32 0.0, %v702
        %v704 = vpop.f32.mrf.mxu0
        %v705 = vadd.f32 0.0, %v704
        %706 = vdwg.mxu0
        %707 = vrot.lane.b32.xlu0 %v557, 112
        %v708 = vpop.permute.xlu0 %707
        %709 = vrot.lane.b32.xlu0 %v557, 80
        %v710 = vpop.permute.xlu0 %709
        %v712 = vsel %vm560, %v708, 0
        %v715 = vsel %vm560, %v710, 0
        %717 = vmatpush.bf16.xpose.msra.mxu0 0
        %718 = vmatpush.bf16.xpose.msra.mxu0 0
        %719 = vmatpush.bf16.xpose.msra.mxu0 0
        %720 = vmatpush.bf16.xpose.msra.mxu0 0
        %721 = vmatpush.bf16.xpose.msra.mxu0 0
        %722 = vmatpush.bf16.xpose.msra.mxu0 0
        %723 = vmatpush.bf16.xpose.msra.mxu0 0
        %724 = vmatpush.bf16.xpose.msra.mxu0 %v715
        %725 = vmatmul.bf16.gmra.mxu0 %v712
        %v726 = vpop.f32.mrf.mxu0
        %v727 = vadd.f32 0.0, %v726
        %v728 = vpop.f32.mrf.mxu0
        %v729 = vadd.f32 0.0, %v728
        %730 = vdwg.mxu0
        %v731 = vsel %vm452, %v727, -1e+30
        %v732 = vsel %vm453, %v729, -1e+30
        %v733 = vsel %vm429, %v731, -inf
        %734 = vmax.xlane.f32.xlu0 %v733
        %v735 = vpop.xlane.xlu0 %734
        %v736 = vsel %vm429, %v732, -inf
        %737 = vmax.xlane.f32.xlu0 %v736
        %v738 = vpop.xlane.xlu0 %737
        %v739 = vsub.f32 %v731, %v735
        %v740 = vsub.f32 %v732, %v738
        %v741 = vmul.f32 %v739, 1.442695
        %v742 = vpow.pop %v741
        %v743 = vmul.f32 %v740, 1.442695
        %v744 = vpow.pop %v743
        %v745 = vsel %vm429, %v742, 0.0
        %746 = vadd.xlane.f32.xlu0 %v745
        %v747 = vpop.xlane.xlu0 %746
        %v748 = vsel %vm429, %v744, 0.0
        %749 = vadd.xlane.f32.xlu0 %v748
        %v750 = vpop.xlane.xlu0 %749
        %v751 = vrcp.pop %v747
        %v752 = vrcp.pop %v750
        %v753 = vmul.f32 %v742, %v751
        %v754 = vmul.f32 %v744, %v752
        %v755 = vpack.c.bf16 %v753, %v753
        %v756 = vpack.c.bf16 %v754, %v754
        %v759 = vunpack.c.l.b16 %v755
        %v760 = vunpack.c.l.b16 %v756
        %v761 = vpack.c.b16 %v760, %v759
        %762 = vrot.lane.b32.xlu0 %v557, 48
        %v763 = vpop.permute.xlu0 %762
        %v766 = vsel %vm429, %v761, 0
        %768 = vmatpush.bf16.msra.mxu0 0
        %769 = vmatpush.bf16.msra.mxu0 0
        %770 = vmatpush.bf16.msra.mxu0 0
        %771 = vmatpush.bf16.msra.mxu0 0
        %772 = vmatpush.bf16.msra.mxu0 0
        %773 = vmatpush.bf16.msra.mxu0 0
        %774 = vmatpush.bf16.msra.mxu0 0
        %775 = vmatpush.bf16.msra.mxu0 %v763
        %776 = vmatmul.bf16.gmra.mxu0 %v766
        %v777 = vpop.f32.mrf.mxu0
        %v778 = vadd.f32 0.0, %v777
        %v779 = vpop.f32.mrf.mxu0
        %v780 = vadd.f32 0.0, %v779
        %781 = vdwg.mxu0
        %782 = vrot.lane.b32.xlu0 %v557, 104
        %v783 = vpop.permute.xlu0 %782
        %784 = vrot.lane.b32.xlu0 %v557, 72
        %v785 = vpop.permute.xlu0 %784
        %v787 = vsel %vm560, %v783, 0
        %v790 = vsel %vm560, %v785, 0
        %792 = vmatpush.bf16.xpose.msra.mxu0 0
        %793 = vmatpush.bf16.xpose.msra.mxu0 0
        %794 = vmatpush.bf16.xpose.msra.mxu0 0
        %795 = vmatpush.bf16.xpose.msra.mxu0 0
        %796 = vmatpush.bf16.xpose.msra.mxu0 0
        %797 = vmatpush.bf16.xpose.msra.mxu0 0
        %798 = vmatpush.bf16.xpose.msra.mxu0 0
        %799 = vmatpush.bf16.xpose.msra.mxu0 %v790
        %800 = vmatmul.bf16.gmra.mxu0 %v787
        %v801 = vpop.f32.mrf.mxu0
        %v802 = vadd.f32 0.0, %v801
        %v803 = vpop.f32.mrf.mxu0
        %v804 = vadd.f32 0.0, %v803
        %805 = vdwg.mxu0
        %v806 = vsel %vm452, %v802, -1e+30
        %v807 = vsel %vm453, %v804, -1e+30
        %v808 = vsel %vm429, %v806, -inf
        %809 = vmax.xlane.f32.xlu0 %v808
        %v810 = vpop.xlane.xlu0 %809
        %v811 = vsel %vm429, %v807, -inf
        %812 = vmax.xlane.f32.xlu0 %v811
        %v813 = vpop.xlane.xlu0 %812
        %v814 = vsub.f32 %v806, %v810
        %v815 = vsub.f32 %v807, %v813
        %v816 = vmul.f32 %v814, 1.442695
        %v817 = vpow.pop %v816
        %v818 = vmul.f32 %v815, 1.442695
        %v819 = vpow.pop %v818
        %v820 = vsel %vm429, %v817, 0.0
        %821 = vadd.xlane.f32.xlu0 %v820
        %v822 = vpop.xlane.xlu0 %821
        %v823 = vsel %vm429, %v819, 0.0
        %824 = vadd.xlane.f32.xlu0 %v823
        %v825 = vpop.xlane.xlu0 %824
        %v826 = vrcp.pop %v822
        %v827 = vrcp.pop %v825
        %v828 = vmul.f32 %v817, %v826
        %v829 = vmul.f32 %v819, %v827
        %v830 = vpack.c.bf16 %v828, %v828
        %v831 = vpack.c.bf16 %v829, %v829
        %v834 = vunpack.c.l.b16 %v830
        %v835 = vunpack.c.l.b16 %v831
        %v836 = vpack.c.b16 %v835, %v834
        %837 = vrot.lane.b32.xlu0 %v557, 40
        %v838 = vpop.permute.xlu0 %837
        %v841 = vsel %vm429, %v836, 0
        %843 = vmatpush.bf16.msra.mxu0 0
        %844 = vmatpush.bf16.msra.mxu0 0
        %845 = vmatpush.bf16.msra.mxu0 0
        %846 = vmatpush.bf16.msra.mxu0 0
        %847 = vmatpush.bf16.msra.mxu0 0
        %848 = vmatpush.bf16.msra.mxu0 0
        %849 = vmatpush.bf16.msra.mxu0 0
        %850 = vmatpush.bf16.msra.mxu0 %v838
        %851 = vmatmul.bf16.gmra.mxu0 %v841
        %v852 = vpop.f32.mrf.mxu0
        %v853 = vadd.f32 0.0, %v852
        %v854 = vpop.f32.mrf.mxu0
        %v855 = vadd.f32 0.0, %v854
        %856 = vdwg.mxu0
        %859 = vrot.lane.b32.xlu0 %v703, 8
        %v860 = vpop.permute.xlu0 %859
        %861 = vrot.lane.b32.xlu0 %v705, 8
        %v862 = vpop.permute.xlu0 %861
        %867 = vrot.lane.b32.xlu0 %v778, 16
        %v868 = vpop.permute.xlu0 %867
        %869 = vrot.lane.b32.xlu0 %v780, 16
        %v870 = vpop.permute.xlu0 %869
        %875 = vrot.lane.b32.xlu0 %v853, 24
        %v876 = vpop.permute.xlu0 %875
        %877 = vrot.lane.b32.xlu0 %v855, 24
        %v878 = vpop.permute.xlu0 %877
        %v881 = vsel %vm560, %v628, %v860
        %v882 = vsel %vm560, %v630, %v862
        %v883 = vsel %vm429, %v881, %v868
        %v884 = vsel %vm429, %v882, %v870
        %vm885 = vcmask 195584
        %v886 = vsel %vm885, %v883, %v876
        %v887 = vsel %vm885, %v884, %v878
        %v888 = vpack.c.bf16 %v887, %v886
        %v889 = vld [vmem:[%s6] sm:$0xf]
        %v890 = vld [vmem:[%s6 + $0x4] sm:$0xf]
        %v891 = vld [vmem:[%s6 + $0x8] sm:$0xf]
        %v892 = vld [vmem:[%s6 + $0xc] sm:$0xf]
        %v893 = vperm.slane %v454, 2
        %v898 = vunpack.c.l.b16 %v889
        %v899 = vunpack.c.l.b16 %v890
        %v900 = vunpack.c.l.b16 %v891
        %v901 = vunpack.c.l.b16 %v892
        %v902 = vpack.c.b16 %v899, %v898
        %v903 = vpack.c.b16 %v901, %v900
        %v907 = vsel %vm455, %v888, 0
        %909 = vmatpush.bf16.msra.mxu0 0
        %910 = vmatpush.bf16.msra.mxu0 0
        %911 = vmatpush.bf16.msra.mxu0 0
        %912 = vmatpush.bf16.msra.mxu0 0
        %913 = vmatpush.bf16.msra.mxu0 0
        %914 = vmatpush.bf16.msra.mxu0 0
        %915 = vmatpush.bf16.msra.mxu0 %v903
        %916 = vmatpush.bf16.msra.mxu0 %v902
        %917 = vmatmul.bf16.gmra.mxu0 %v907
        %v918 = vpop.f32.mrf.mxu0
        %v919 = vadd.f32 %v893, %v918
        %v920 = vpop.f32.mrf.mxu0
        %v921 = vadd.f32 %v893, %v920
        %922 = vdwg.mxu0
        %v923 = vadd.f32 %v443, %v919
        %v924 = vadd.f32 %v445, %v921
        %v925 = vsel %vm455, %v923, 0.0
        %926 = vadd.xlane.f32.xlu0 %v925
        %v927 = vpop.xlane.xlu0 %926
        %v928 = vsel %vm455, %v924, 0.0
        %929 = vadd.xlane.f32.xlu0 %v928
        %v930 = vpop.xlane.xlu0 %929
        %v931 = vmul.f32 %v927, %v468
        %v932 = vmul.f32 %v930, %v468
        %v933 = vsub.f32 %v923, %v931
        %v934 = vsub.f32 %v924, %v932
        %v935 = vmul.f32 %v933, %v933
        %v936 = vmul.f32 %v934, %v934
        %v937 = vsel %vm455, %v935, 0.0
        %938 = vadd.xlane.f32.xlu0 %v937
        %v939 = vpop.xlane.xlu0 %938
        %v940 = vsel %vm455, %v936, 0.0
        %941 = vadd.xlane.f32.xlu0 %v940
        %v942 = vpop.xlane.xlu0 %941
        %v943 = vmul.f32 %v939, %v468
        %v944 = vmul.f32 %v942, %v468
        %v945 = vadd.f32 %v943, 1e-05
        %v946 = vadd.f32 %v944, 1e-05
        %v947 = vrsqrt.pop %v945
        %v948 = vmul.f32 %v947, %v945
        %v949 = vmul.f32 %v948, %v947
        %v950 = vmul.f32 0.5, %v949
        %v951 = vsub.f32 1.5, %v950
        %v952 = vmul.f32 %v947, %v951
        %vm953 = vweird.f32 %v945
        %vm954 = vweird.f32 %v947
        %vm955 = vmor %vm953, %vm954
        %v956 = vsel %vm955, %v947, %v952
        %v957 = vrsqrt.pop %v946
        %v958 = vmul.f32 %v957, %v946
        %v959 = vmul.f32 %v958, %v957
        %v960 = vmul.f32 0.5, %v959
        %v961 = vsub.f32 1.5, %v960
        %v962 = vmul.f32 %v957, %v961
        %vm963 = vweird.f32 %v946
        %vm964 = vweird.f32 %v957
        %vm965 = vmor %vm963, %vm964
        %v966 = vsel %vm965, %v957, %v962
        %v967 = vmul.f32 %v933, %v956
        %v968 = vmul.f32 %v934, %v966
        %v969 = vperm.slane %v454, 3
        %v970 = vmul.f32 %v967, %v969
        %v971 = vmul.f32 %v968, %v969
        %v972 = vperm.slane %v454, 4
        %v973 = vadd.f32 %v970, %v972
        %v974 = vadd.f32 %v971, %v972
        %v975 = vpack.c.bf16 %v974, %v973
        %v976 = vld [vmem:[%s7] sm:$0xf]
        %v977 = vld [vmem:[%s7 + $0x4] sm:$0xf]
        %v978 = vld [vmem:[%s7 + $0x8] sm:$0xf]
        %v979 = vld [vmem:[%s7 + $0xc] sm:$0xf]
        %v980 = vld [vmem:[%s8] sm:$0x1]
        %v982 = vperm.slane %v980, 0
        %v988 = vunpack.c.l.b16 %v976
        %v989 = vunpack.c.l.b16 %v977
        %v990 = vunpack.c.l.b16 %v978
        %v991 = vunpack.c.l.b16 %v979
        %v992 = vpack.c.b16 %v989, %v988
        %v993 = vpack.c.b16 %v991, %v990
        %v997 = vsel %vm455, %v975, 0
        %999 = vmatpush.bf16.msra.mxu0 0
        %1000 = vmatpush.bf16.msra.mxu0 0
        %1001 = vmatpush.bf16.msra.mxu0 0
        %1002 = vmatpush.bf16.msra.mxu0 0
        %1003 = vmatpush.bf16.msra.mxu0 0
        %1004 = vmatpush.bf16.msra.mxu0 0
        %1005 = vmatpush.bf16.msra.mxu0 %v993
        %1006 = vmatpush.bf16.msra.mxu0 %v992
        %1007 = vmatmul.bf16.gmra.mxu0 %v997
        %v1008 = vpop.f32.mrf.mxu0
        %v1009 = vadd.f32 %v982, %v1008
        %v1010 = vpop.f32.mrf.mxu0
        %v1011 = vadd.f32 %v982, %v1010
        %1012 = vdwg.mxu0
        %v1013 = vmul.f32 %v1009, 0.5
        %v1014 = vmul.f32 %v1011, 0.5
        %v1015 = vmul.f32 %v1009, 0.044715
        %v1016 = vmul.f32 %v1011, 0.044715
        %v1017 = vmul.f32 %v1015, %v1009
        %v1018 = vmul.f32 %v1016, %v1011
        %v1019 = vmul.f32 %v1017, %v1009
        %v1020 = vmul.f32 %v1018, %v1011
        %v1021 = vadd.f32 %v1009, %v1019
        %v1022 = vadd.f32 %v1011, %v1020
        %v1023 = vmul.f32 %v1021, 0.7978846
        %v1024 = vmul.f32 %v1022, 0.7978846
        %v1025 = vtanh.pop %v1023
        %v1026 = vtanh.pop %v1024
        %v1027 = vadd.f32 %v1025, 1.0
        %v1028 = vadd.f32 %v1026, 1.0
        %v1029 = vmul.f32 %v1013, %v1027
        %v1030 = vmul.f32 %v1014, %v1028
        %v1031 = vpack.c.bf16 %v1030, %v1029
        %v1032 = vld [vmem:[%s9] sm:$0xf]
        %v1033 = vld [vmem:[%s9 + $0x4] sm:$0xf]
        %v1034 = vld [vmem:[%s9 + $0x8] sm:$0xf]
        %v1035 = vld [vmem:[%s9 + $0xc] sm:$0xf]
        %v1036 = vld [vmem:[%s9 + $0x10] sm:$0xf]
        %v1037 = vld [vmem:[%s9 + $0x14] sm:$0xf]
        %v1038 = vld [vmem:[%s9 + $0x18] sm:$0xf]
        %v1039 = vld [vmem:[%s9 + $0x1c] sm:$0xf]
        %v1040 = vld [vmem:[%s9 + $0x20] sm:$0xf]
        %v1041 = vld [vmem:[%s9 + $0x24] sm:$0xf]
        %v1042 = vld [vmem:[%s9 + $0x28] sm:$0xf]
        %v1043 = vld [vmem:[%s9 + $0x2c] sm:$0xf]
        %v1044 = vld [vmem:[%s9 + $0x30] sm:$0xf]
        %v1045 = vld [vmem:[%s9 + $0x34] sm:$0xf]
        %v1046 = vld [vmem:[%s9 + $0x38] sm:$0xf]
        %v1047 = vld [vmem:[%s9 + $0x3c] sm:$0xf]
        %v1048 = vperm.slane %v454, 5
        %v1065 = vunpack.c.l.b16 %v1032
        %v1066 = vunpack.c.l.b16 %v1033
        %v1067 = vunpack.c.l.b16 %v1034
        %v1068 = vunpack.c.l.b16 %v1035
        %v1069 = vunpack.c.l.b16 %v1036
        %v1070 = vunpack.c.l.b16 %v1037
        %v1071 = vunpack.c.l.b16 %v1038
        %v1072 = vunpack.c.l.b16 %v1039
        %v1073 = vunpack.c.l.b16 %v1040
        %v1074 = vunpack.c.l.b16 %v1041
        %v1075 = vunpack.c.l.b16 %v1042
        %v1076 = vunpack.c.l.b16 %v1043
        %v1077 = vunpack.c.l.b16 %v1044
        %v1078 = vunpack.c.l.b16 %v1045
        %v1079 = vunpack.c.l.b16 %v1046
        %v1080 = vunpack.c.l.b16 %v1047
        %v1081 = vpack.c.b16 %v1066, %v1065
        %v1082 = vpack.c.b16 %v1068, %v1067
        %v1083 = vpack.c.b16 %v1070, %v1069
        %v1084 = vpack.c.b16 %v1072, %v1071
        %v1085 = vpack.c.b16 %v1074, %v1073
        %v1086 = vpack.c.b16 %v1076, %v1075
        %v1087 = vpack.c.b16 %v1078, %v1077
        %v1088 = vpack.c.b16 %v1080, %v1079
        %1097 = vmatpush.bf16.msra.mxu0 %v1088
        %1098 = vmatpush.bf16.msra.mxu0 %v1087
        %1099 = vmatpush.bf16.msra.mxu0 %v1086
        %1100 = vmatpush.bf16.msra.mxu0 %v1085
        %1101 = vmatpush.bf16.msra.mxu0 %v1084
        %1102 = vmatpush.bf16.msra.mxu0 %v1083
        %1103 = vmatpush.bf16.msra.mxu0 %v1082
        %1104 = vmatpush.bf16.msra.mxu0 %v1081
        %1105 = vmatmul.bf16.gmra.mxu0 %v1031
        %v1106 = vpop.f32.mrf.mxu0
        %v1107 = vadd.f32 %v1048, %v1106
        %v1108 = vpop.f32.mrf.mxu0
        %v1109 = vadd.f32 %v1048, %v1108
        %1110 = vdwg.mxu0
        %v1111 = vadd.f32 %v923, %v1107
        %v1112 = vadd.f32 %v924, %v1109
        %s1113 = scalar_lea.vmem %s3, 8
        %v1114 = vld [vmem:[%s1113] sm:$0x3f]
        %v1115 = vsel %vm455, %v1111, 0.0
        %1116 = vadd.xlane.f32.xlu0 %v1115
        %v1117 = vpop.xlane.xlu0 %1116
        %v1118 = vsel %vm455, %v1112, 0.0
        %1119 = vadd.xlane.f32.xlu0 %v1118
        %v1120 = vpop.xlane.xlu0 %1119
        %v1121 = vmul.f32 %v1117, %v468
        %v1122 = vmul.f32 %v1120, %v468
        %v1123 = vsub.f32 %v1111, %v1121
        %v1124 = vsub.f32 %v1112, %v1122
        %v1125 = vmul.f32 %v1123, %v1123
        %v1126 = vmul.f32 %v1124, %v1124
        %v1127 = vsel %vm455, %v1125, 0.0
        %1128 = vadd.xlane.f32.xlu0 %v1127
        %v1129 = vpop.xlane.xlu0 %1128
        %v1130 = vsel %vm455, %v1126, 0.0
        %1131 = vadd.xlane.f32.xlu0 %v1130
        %v1132 = vpop.xlane.xlu0 %1131
        %v1133 = vmul.f32 %v1129, %v468
        %v1134 = vmul.f32 %v1132, %v468
        %v1135 = vadd.f32 %v1133, 1e-05
        %v1136 = vadd.f32 %v1134, 1e-05
        %v1137 = vrsqrt.pop %v1135
        %v1138 = vmul.f32 %v1137, %v1135
        %v1139 = vmul.f32 %v1138, %v1137
        %v1140 = vmul.f32 0.5, %v1139
        %v1141 = vsub.f32 1.5, %v1140
        %v1142 = vmul.f32 %v1137, %v1141
        %vm1143 = vweird.f32 %v1135
        %vm1144 = vweird.f32 %v1137
        %vm1145 = vmor %vm1143, %vm1144
        %v1146 = vsel %vm1145, %v1137, %v1142
        %v1147 = vrsqrt.pop %v1136
        %v1148 = vmul.f32 %v1147, %v1136
        %v1149 = vmul.f32 %v1148, %v1147
        %v1150 = vmul.f32 0.5, %v1149
        %v1151 = vsub.f32 1.5, %v1150
        %v1152 = vmul.f32 %v1147, %v1151
        %vm1153 = vweird.f32 %v1136
        %vm1154 = vweird.f32 %v1147
        %vm1155 = vmor %vm1153, %vm1154
        %v1156 = vsel %vm1155, %v1147, %v1152
        %v1157 = vmul.f32 %v1123, %v1146
        %v1158 = vmul.f32 %v1124, %v1156
        %v1159 = vperm.slane %v1114, 0
        %v1160 = vmul.f32 %v1157, %v1159
        %v1161 = vmul.f32 %v1158, %v1159
        %v1162 = vperm.slane %v1114, 1
        %v1163 = vadd.f32 %v1160, %v1162
        %v1164 = vadd.f32 %v1161, %v1162
        %v1165 = vpack.c.bf16 %v1164, %v1163
        %s1166 = scalar_lea.vmem %s4, 16
        %v1167 = vld [vmem:[%s1166] sm:$0xf]
        %v1168 = vld [vmem:[%s1166 + $0x4] sm:$0xf]
        %v1169 = vld [vmem:[%s1166 + $0x8] sm:$0xf]
        %v1170 = vld [vmem:[%s1166 + $0xc] sm:$0xf]
        %s1171 = scalar_lea.vmem %s5, 1
        %v1172 = vld [vmem:[%s1171] sm:$0x1]
        %v1174 = vperm.slane %v1172, 0
        %v1180 = vunpack.c.l.b16 %v1167
        %v1181 = vunpack.c.l.b16 %v1168
        %v1182 = vunpack.c.l.b16 %v1169
        %v1183 = vunpack.c.l.b16 %v1170
        %v1184 = vpack.c.b16 %v1181, %v1180
        %v1185 = vpack.c.b16 %v1183, %v1182
        %v1189 = vsel %vm455, %v1165, 0
        %1191 = vmatpush.bf16.msra.mxu0 0
        %1192 = vmatpush.bf16.msra.mxu0 0
        %1193 = vmatpush.bf16.msra.mxu0 0
        %1194 = vmatpush.bf16.msra.mxu0 0
        %1195 = vmatpush.bf16.msra.mxu0 0
        %1196 = vmatpush.bf16.msra.mxu0 0
        %1197 = vmatpush.bf16.msra.mxu0 %v1185
        %1198 = vmatpush.bf16.msra.mxu0 %v1184
        %1199 = vmatmul.bf16.gmra.mxu0 %v1189
        %v1200 = vpop.f32.mrf.mxu0
        %v1201 = vadd.f32 %v1174, %v1200
        %v1202 = vpop.f32.mrf.mxu0
        %v1203 = vadd.f32 %v1174, %v1202
        %1204 = vdwg.mxu0
        %v1205 = vpack.c.bf16 %v1201, %v1201
        %v1206 = vpack.c.bf16 %v1203, %v1203
        %v1209 = vunpack.c.l.b16 %v1205
        %v1210 = vunpack.c.l.b16 %v1206
        %v1211 = vpack.c.b16 %v1210, %v1209
        %1212 = vrot.lane.b32.xlu0 %v1211, 96
        %v1213 = vpop.permute.xlu0 %1212
        %v1215 = vsel %vm560, %v1211, 0
        %v1218 = vsel %vm560, %v1213, 0
        %1220 = vmatpush.bf16.xpose.msra.mxu0 0
        %1221 = vmatpush.bf16.xpose.msra.mxu0 0
        %1222 = vmatpush.bf16.xpose.msra.mxu0 0
        %1223 = vmatpush.bf16.xpose.msra.mxu0 0
        %1224 = vmatpush.bf16.xpose.msra.mxu0 0
        %1225 = vmatpush.bf16.xpose.msra.mxu0 0
        %1226 = vmatpush.bf16.xpose.msra.mxu0 0
        %1227 = vmatpush.bf16.xpose.msra.mxu0 %v1218
        %1228 = vmatmul.bf16.gmra.mxu0 %v1215
        %v1229 = vpop.f32.mrf.mxu0
        %v1230 = vadd.f32 0.0, %v1229
        %v1231 = vpop.f32.mrf.mxu0
        %v1232 = vadd.f32 0.0, %v1231
        %1233 = vdwg.mxu0
        %v1234 = vsel %vm452, %v1230, -1e+30
        %v1235 = vsel %vm453, %v1232, -1e+30
        %v1236 = vsel %vm429, %v1234, -inf
        %1237 = vmax.xlane.f32.xlu0 %v1236
        %v1238 = vpop.xlane.xlu0 %1237
        %v1239 = vsel %vm429, %v1235, -inf
        %1240 = vmax.xlane.f32.xlu0 %v1239
        %v1241 = vpop.xlane.xlu0 %1240
        %v1242 = vsub.f32 %v1234, %v1238
        %v1243 = vsub.f32 %v1235, %v1241
        %v1244 = vmul.f32 %v1242, 1.442695
        %v1245 = vpow.pop %v1244
        %v1246 = vmul.f32 %v1243, 1.442695
        %v1247 = vpow.pop %v1246
        %v1248 = vsel %vm429, %v1245, 0.0
        %1249 = vadd.xlane.f32.xlu0 %v1248
        %v1250 = vpop.xlane.xlu0 %1249
        %v1251 = vsel %vm429, %v1247, 0.0
        %1252 = vadd.xlane.f32.xlu0 %v1251
        %v1253 = vpop.xlane.xlu0 %1252
        %v1254 = vrcp.pop %v1250
        %v1255 = vrcp.pop %v1253
        %v1256 = vmul.f32 %v1245, %v1254
        %v1257 = vmul.f32 %v1247, %v1255
        %v1258 = vpack.c.bf16 %v1256, %v1256
        %v1259 = vpack.c.bf16 %v1257, %v1257
        %v1262 = vunpack.c.l.b16 %v1258
        %v1263 = vunpack.c.l.b16 %v1259
        %v1264 = vpack.c.b16 %v1263, %v1262
        %1265 = vrot.lane.b32.xlu0 %v1211, 64
        %v1266 = vpop.permute.xlu0 %1265
        %v1269 = vsel %vm429, %v1264, 0
        %1271 = vmatpush.bf16.msra.mxu0 0
        %1272 = vmatpush.bf16.msra.mxu0 0
        %1273 = vmatpush.bf16.msra.mxu0 0
        %1274 = vmatpush.bf16.msra.mxu0 0
        %1275 = vmatpush.bf16.msra.mxu0 0
        %1276 = vmatpush.bf16.msra.mxu0 0
        %1277 = vmatpush.bf16.msra.mxu0 0
        %1278 = vmatpush.bf16.msra.mxu0 %v1266
        %1279 = vmatmul.bf16.gmra.mxu0 %v1269
        %v1280 = vpop.f32.mrf.mxu0
        %v1281 = vadd.f32 0.0, %v1280
        %v1282 = vpop.f32.mrf.mxu0
        %v1283 = vadd.f32 0.0, %v1282
        %1284 = vdwg.mxu0
        %1285 = vrot.lane.b32.xlu0 %v1211, 120
        %v1286 = vpop.permute.xlu0 %1285
        %1287 = vrot.lane.b32.xlu0 %v1211, 88
        %v1288 = vpop.permute.xlu0 %1287
        %v1290 = vsel %vm560, %v1286, 0
        %v1293 = vsel %vm560, %v1288, 0
        %1295 = vmatpush.bf16.xpose.msra.mxu0 0
        %1296 = vmatpush.bf16.xpose.msra.mxu0 0
        %1297 = vmatpush.bf16.xpose.msra.mxu0 0
        %1298 = vmatpush.bf16.xpose.msra.mxu0 0
        %1299 = vmatpush.bf16.xpose.msra.mxu0 0
        %1300 = vmatpush.bf16.xpose.msra.mxu0 0
        %1301 = vmatpush.bf16.xpose.msra.mxu0 0
        %1302 = vmatpush.bf16.xpose.msra.mxu0 %v1293
        %1303 = vmatmul.bf16.gmra.mxu0 %v1290
        %v1304 = vpop.f32.mrf.mxu0
        %v1305 = vadd.f32 0.0, %v1304
        %v1306 = vpop.f32.mrf.mxu0
        %v1307 = vadd.f32 0.0, %v1306
        %1308 = vdwg.mxu0
        %v1309 = vsel %vm452, %v1305, -1e+30
        %v1310 = vsel %vm453, %v1307, -1e+30
        %v1311 = vsel %vm429, %v1309, -inf
        %1312 = vmax.xlane.f32.xlu0 %v1311
        %v1313 = vpop.xlane.xlu0 %1312
        %v1314 = vsel %vm429, %v1310, -inf
        %1315 = vmax.xlane.f32.xlu0 %v1314
        %v1316 = vpop.xlane.xlu0 %1315
        %v1317 = vsub.f32 %v1309, %v1313
        %v1318 = vsub.f32 %v1310, %v1316
        %v1319 = vmul.f32 %v1317, 1.442695
        %v1320 = vpow.pop %v1319
        %v1321 = vmul.f32 %v1318, 1.442695
        %v1322 = vpow.pop %v1321
        %v1323 = vsel %vm429, %v1320, 0.0
        %1324 = vadd.xlane.f32.xlu0 %v1323
        %v1325 = vpop.xlane.xlu0 %1324
        %v1326 = vsel %vm429, %v1322, 0.0
        %1327 = vadd.xlane.f32.xlu0 %v1326
        %v1328 = vpop.xlane.xlu0 %1327
        %v1329 = vrcp.pop %v1325
        %v1330 = vrcp.pop %v1328
        %v1331 = vmul.f32 %v1320, %v1329
        %v1332 = vmul.f32 %v1322, %v1330
        %v1333 = vpack.c.bf16 %v1331, %v1331
        %v1334 = vpack.c.bf16 %v1332, %v1332
        %v1337 = vunpack.c.l.b16 %v1333
        %v1338 = vunpack.c.l.b16 %v1334
        %v1339 = vpack.c.b16 %v1338, %v1337
        %1340 = vrot.lane.b32.xlu0 %v1211, 56
        %v1341 = vpop.permute.xlu0 %1340
        %v1344 = vsel %vm429, %v1339, 0
        %1346 = vmatpush.bf16.msra.mxu0 0
        %1347 = vmatpush.bf16.msra.mxu0 0
        %1348 = vmatpush.bf16.msra.mxu0 0
        %1349 = vmatpush.bf16.msra.mxu0 0
        %1350 = vmatpush.bf16.msra.mxu0 0
        %1351 = vmatpush.bf16.msra.mxu0 0
        %1352 = vmatpush.bf16.msra.mxu0 0
        %1353 = vmatpush.bf16.msra.mxu0 %v1341
        %1354 = vmatmul.bf16.gmra.mxu0 %v1344
        %v1355 = vpop.f32.mrf.mxu0
        %v1356 = vadd.f32 0.0, %v1355
        %v1357 = vpop.f32.mrf.mxu0
        %v1358 = vadd.f32 0.0, %v1357
        %1359 = vdwg.mxu0
        %1360 = vrot.lane.b32.xlu0 %v1211, 112
        %v1361 = vpop.permute.xlu0 %1360
        %1362 = vrot.lane.b32.xlu0 %v1211, 80
        %v1363 = vpop.permute.xlu0 %1362
        %v1365 = vsel %vm560, %v1361, 0
        %v1368 = vsel %vm560, %v1363, 0
        %1370 = vmatpush.bf16.xpose.msra.mxu0 0
        %1371 = vmatpush.bf16.xpose.msra.mxu0 0
        %1372 = vmatpush.bf16.xpose.msra.mxu0 0
        %1373 = vmatpush.bf16.xpose.msra.mxu0 0
        %1374 = vmatpush.bf16.xpose.msra.mxu0 0
        %1375 = vmatpush.bf16.xpose.msra.mxu0 0
        %1376 = vmatpush.bf16.xpose.msra.mxu0 0
        %1377 = vmatpush.bf16.xpose.msra.mxu0 %v1368
        %1378 = vmatmul.bf16.gmra.mxu0 %v1365
        %v1379 = vpop.f32.mrf.mxu0
        %v1380 = vadd.f32 0.0, %v1379
        %v1381 = vpop.f32.mrf.mxu0
        %v1382 = vadd.f32 0.0, %v1381
        %1383 = vdwg.mxu0
        %v1384 = vsel %vm452, %v1380, -1e+30
        %v1385 = vsel %vm453, %v1382, -1e+30
        %v1386 = vsel %vm429, %v1384, -inf
        %1387 = vmax.xlane.f32.xlu0 %v1386
        %v1388 = vpop.xlane.xlu0 %1387
        %v1389 = vsel %vm429, %v1385, -inf
        %1390 = vmax.xlane.f32.xlu0 %v1389
        %v1391 = vpop.xlane.xlu0 %1390
        %v1392 = vsub.f32 %v1384, %v1388
        %v1393 = vsub.f32 %v1385, %v1391
        %v1394 = vmul.f32 %v1392, 1.442695
        %v1395 = vpow.pop %v1394
        %v1396 = vmul.f32 %v1393, 1.442695
        %v1397 = vpow.pop %v1396
        %v1398 = vsel %vm429, %v1395, 0.0
        %1399 = vadd.xlane.f32.xlu0 %v1398
        %v1400 = vpop.xlane.xlu0 %1399
        %v1401 = vsel %vm429, %v1397, 0.0
        %1402 = vadd.xlane.f32.xlu0 %v1401
        %v1403 = vpop.xlane.xlu0 %1402
        %v1404 = vrcp.pop %v1400
        %v1405 = vrcp.pop %v1403
        %v1406 = vmul.f32 %v1395, %v1404
        %v1407 = vmul.f32 %v1397, %v1405
        %v1408 = vpack.c.bf16 %v1406, %v1406
        %v1409 = vpack.c.bf16 %v1407, %v1407
        %v1412 = vunpack.c.l.b16 %v1408
        %v1413 = vunpack.c.l.b16 %v1409
        %v1414 = vpack.c.b16 %v1413, %v1412
        %1415 = vrot.lane.b32.xlu0 %v1211, 48
        %v1416 = vpop.permute.xlu0 %1415
        %v1419 = vsel %vm429, %v1414, 0
        %1421 = vmatpush.bf16.msra.mxu0 0
        %1422 = vmatpush.bf16.msra.mxu0 0
        %1423 = vmatpush.bf16.msra.mxu0 0
        %1424 = vmatpush.bf16.msra.mxu0 0
        %1425 = vmatpush.bf16.msra.mxu0 0
        %1426 = vmatpush.bf16.msra.mxu0 0
        %1427 = vmatpush.bf16.msra.mxu0 0
        %1428 = vmatpush.bf16.msra.mxu0 %v1416
        %1429 = vmatmul.bf16.gmra.mxu0 %v1419
        %v1430 = vpop.f32.mrf.mxu0
        %v1431 = vadd.f32 0.0, %v1430
        %v1432 = vpop.f32.mrf.mxu0
        %v1433 = vadd.f32 0.0, %v1432
        %1434 = vdwg.mxu0
        %1435 = vrot.lane.b32.xlu0 %v1211, 104
        %v1436 = vpop.permute.xlu0 %1435
        %1437 = vrot.lane.b32.xlu0 %v1211, 72
        %v1438 = vpop.permute.xlu0 %1437
        %v1440 = vsel %vm560, %v1436, 0
        %v1443 = vsel %vm560, %v1438, 0
        %1445 = vmatpush.bf16.xpose.msra.mxu0 0
        %1446 = vmatpush.bf16.xpose.msra.mxu0 0
        %1447 = vmatpush.bf16.xpose.msra.mxu0 0
        %1448 = vmatpush.bf16.xpose.msra.mxu0 0
        %1449 = vmatpush.bf16.xpose.msra.mxu0 0
        %1450 = vmatpush.bf16.xpose.msra.mxu0 0
        %1451 = vmatpush.bf16.xpose.msra.mxu0 0
        %1452 = vmatpush.bf16.xpose.msra.mxu0 %v1443
        %1453 = vmatmul.bf16.gmra.mxu0 %v1440
        %v1454 = vpop.f32.mrf.mxu0
        %v1455 = vadd.f32 0.0, %v1454
        %v1456 = vpop.f32.mrf.mxu0
        %v1457 = vadd.f32 0.0, %v1456
        %1458 = vdwg.mxu0
        %v1459 = vsel %vm452, %v1455, -1e+30
        %v1460 = vsel %vm453, %v1457, -1e+30
        %v1461 = vsel %vm429, %v1459, -inf
        %1462 = vmax.xlane.f32.xlu0 %v1461
        %v1463 = vpop.xlane.xlu0 %1462
        %v1464 = vsel %vm429, %v1460, -inf
        %1465 = vmax.xlane.f32.xlu0 %v1464
        %v1466 = vpop.xlane.xlu0 %1465
        %v1467 = vsub.f32 %v1459, %v1463
        %v1468 = vsub.f32 %v1460, %v1466
        %v1469 = vmul.f32 %v1467, 1.442695
        %v1470 = vpow.pop %v1469
        %v1471 = vmul.f32 %v1468, 1.442695
        %v1472 = vpow.pop %v1471
        %v1473 = vsel %vm429, %v1470, 0.0
        %1474 = vadd.xlane.f32.xlu0 %v1473
        %v1475 = vpop.xlane.xlu0 %1474
        %v1476 = vsel %vm429, %v1472, 0.0
        %1477 = vadd.xlane.f32.xlu0 %v1476
        %v1478 = vpop.xlane.xlu0 %1477
        %v1479 = vrcp.pop %v1475
        %v1480 = vrcp.pop %v1478
        %v1481 = vmul.f32 %v1470, %v1479
        %v1482 = vmul.f32 %v1472, %v1480
        %v1483 = vpack.c.bf16 %v1481, %v1481
        %v1484 = vpack.c.bf16 %v1482, %v1482
        %v1487 = vunpack.c.l.b16 %v1483
        %v1488 = vunpack.c.l.b16 %v1484
        %v1489 = vpack.c.b16 %v1488, %v1487
        %1490 = vrot.lane.b32.xlu0 %v1211, 40
        %v1491 = vpop.permute.xlu0 %1490
        %v1494 = vsel %vm429, %v1489, 0
        %1496 = vmatpush.bf16.msra.mxu0 0
        %1497 = vmatpush.bf16.msra.mxu0 0
        %1498 = vmatpush.bf16.msra.mxu0 0
        %1499 = vmatpush.bf16.msra.mxu0 0
        %1500 = vmatpush.bf16.msra.mxu0 0
        %1501 = vmatpush.bf16.msra.mxu0 0
        %1502 = vmatpush.bf16.msra.mxu0 0
        %1503 = vmatpush.bf16.msra.mxu0 %v1491
        %1504 = vmatmul.bf16.gmra.mxu0 %v1494
        %v1505 = vpop.f32.mrf.mxu0
        %v1506 = vadd.f32 0.0, %v1505
        %v1507 = vpop.f32.mrf.mxu0
        %v1508 = vadd.f32 0.0, %v1507
        %1509 = vdwg.mxu0
        %1512 = vrot.lane.b32.xlu0 %v1356, 8
        %v1513 = vpop.permute.xlu0 %1512
        %1514 = vrot.lane.b32.xlu0 %v1358, 8
        %v1515 = vpop.permute.xlu0 %1514
        %1520 = vrot.lane.b32.xlu0 %v1431, 16
        %v1521 = vpop.permute.xlu0 %1520
        %1522 = vrot.lane.b32.xlu0 %v1433, 16
        %v1523 = vpop.permute.xlu0 %1522
        %1528 = vrot.lane.b32.xlu0 %v1506, 24
        %v1529 = vpop.permute.xlu0 %1528
        %1530 = vrot.lane.b32.xlu0 %v1508, 24
        %v1531 = vpop.permute.xlu0 %1530
        %v1534 = vsel %vm560, %v1281, %v1513
        %v1535 = vsel %vm560, %v1283, %v1515
        %v1536 = vsel %vm429, %v1534, %v1521
        %v1537 = vsel %vm429, %v1535, %v1523
        %v1538 = vsel %vm885, %v1536, %v1529
        %v1539 = vsel %vm885, %v1537, %v1531
        %v1540 = vpack.c.bf16 %v1539, %v1538
        %s1541 = scalar_lea.vmem %s6, 16
        %v1542 = vld [vmem:[%s1541] sm:$0xf]
        %v1543 = vld [vmem:[%s1541 + $0x4] sm:$0xf]
        %v1544 = vld [vmem:[%s1541 + $0x8] sm:$0xf]
        %v1545 = vld [vmem:[%s1541 + $0xc] sm:$0xf]
        %v1546 = vperm.slane %v1114, 2
        %v1551 = vunpack.c.l.b16 %v1542
        %v1552 = vunpack.c.l.b16 %v1543
        %v1553 = vunpack.c.l.b16 %v1544
        %v1554 = vunpack.c.l.b16 %v1545
        %v1555 = vpack.c.b16 %v1552, %v1551
        %v1556 = vpack.c.b16 %v1554, %v1553
        %v1560 = vsel %vm455, %v1540, 0
        %1562 = vmatpush.bf16.msra.mxu0 0
        %1563 = vmatpush.bf16.msra.mxu0 0
        %1564 = vmatpush.bf16.msra.mxu0 0
        %1565 = vmatpush.bf16.msra.mxu0 0
        %1566 = vmatpush.bf16.msra.mxu0 0
        %1567 = vmatpush.bf16.msra.mxu0 0
        %1568 = vmatpush.bf16.msra.mxu0 %v1556
        %1569 = vmatpush.bf16.msra.mxu0 %v1555
        %1570 = vmatmul.bf16.gmra.mxu0 %v1560
        %v1571 = vpop.f32.mrf.mxu0
        %v1572 = vadd.f32 %v1546, %v1571
        %v1573 = vpop.f32.mrf.mxu0
        %v1574 = vadd.f32 %v1546, %v1573
        %1575 = vdwg.mxu0
        %v1576 = vadd.f32 %v1111, %v1572
        %v1577 = vadd.f32 %v1112, %v1574
        %v1578 = vsel %vm455, %v1576, 0.0
        %1579 = vadd.xlane.f32.xlu0 %v1578
        %v1580 = vpop.xlane.xlu0 %1579
        %v1581 = vsel %vm455, %v1577, 0.0
        %1582 = vadd.xlane.f32.xlu0 %v1581
        %v1583 = vpop.xlane.xlu0 %1582
        %v1584 = vmul.f32 %v1580, %v468
        %v1585 = vmul.f32 %v1583, %v468
        %v1586 = vsub.f32 %v1576, %v1584
        %v1587 = vsub.f32 %v1577, %v1585
        %v1588 = vmul.f32 %v1586, %v1586
        %v1589 = vmul.f32 %v1587, %v1587
        %v1590 = vsel %vm455, %v1588, 0.0
        %1591 = vadd.xlane.f32.xlu0 %v1590
        %v1592 = vpop.xlane.xlu0 %1591
        %v1593 = vsel %vm455, %v1589, 0.0
        %1594 = vadd.xlane.f32.xlu0 %v1593
        %v1595 = vpop.xlane.xlu0 %1594
        %v1596 = vmul.f32 %v1592, %v468
        %v1597 = vmul.f32 %v1595, %v468
        %v1598 = vadd.f32 %v1596, 1e-05
        %v1599 = vadd.f32 %v1597, 1e-05
        %v1600 = vrsqrt.pop %v1598
        %v1601 = vmul.f32 %v1600, %v1598
        %v1602 = vmul.f32 %v1601, %v1600
        %v1603 = vmul.f32 0.5, %v1602
        %v1604 = vsub.f32 1.5, %v1603
        %v1605 = vmul.f32 %v1600, %v1604
        %vm1606 = vweird.f32 %v1598
        %vm1607 = vweird.f32 %v1600
        %vm1608 = vmor %vm1606, %vm1607
        %v1609 = vsel %vm1608, %v1600, %v1605
        %v1610 = vrsqrt.pop %v1599
        %v1611 = vmul.f32 %v1610, %v1599
        %v1612 = vmul.f32 %v1611, %v1610
        %v1613 = vmul.f32 0.5, %v1612
        %v1614 = vsub.f32 1.5, %v1613
        %v1615 = vmul.f32 %v1610, %v1614
        %vm1616 = vweird.f32 %v1599
        %vm1617 = vweird.f32 %v1610
        %vm1618 = vmor %vm1616, %vm1617
        %v1619 = vsel %vm1618, %v1610, %v1615
        %v1620 = vmul.f32 %v1586, %v1609
        %v1621 = vmul.f32 %v1587, %v1619
        %v1622 = vperm.slane %v1114, 3
        %v1623 = vmul.f32 %v1620, %v1622
        %v1624 = vmul.f32 %v1621, %v1622
        %v1625 = vperm.slane %v1114, 4
        %v1626 = vadd.f32 %v1623, %v1625
        %v1627 = vadd.f32 %v1624, %v1625
        %v1628 = vpack.c.bf16 %v1627, %v1626
        %s1629 = scalar_lea.vmem %s7, 16
        %v1630 = vld [vmem:[%s1629] sm:$0xf]
        %v1631 = vld [vmem:[%s1629 + $0x4] sm:$0xf]
        %v1632 = vld [vmem:[%s1629 + $0x8] sm:$0xf]
        %v1633 = vld [vmem:[%s1629 + $0xc] sm:$0xf]
        %s1634 = scalar_lea.vmem %s8, 1
        %v1635 = vld [vmem:[%s1634] sm:$0x1]
        %v1637 = vperm.slane %v1635, 0
        %v1643 = vunpack.c.l.b16 %v1630
        %v1644 = vunpack.c.l.b16 %v1631
        %v1645 = vunpack.c.l.b16 %v1632
        %v1646 = vunpack.c.l.b16 %v1633
        %v1647 = vpack.c.b16 %v1644, %v1643
        %v1648 = vpack.c.b16 %v1646, %v1645
        %v1652 = vsel %vm455, %v1628, 0
        %1654 = vmatpush.bf16.msra.mxu0 0
        %1655 = vmatpush.bf16.msra.mxu0 0
        %1656 = vmatpush.bf16.msra.mxu0 0
        %1657 = vmatpush.bf16.msra.mxu0 0
        %1658 = vmatpush.bf16.msra.mxu0 0
        %1659 = vmatpush.bf16.msra.mxu0 0
        %1660 = vmatpush.bf16.msra.mxu0 %v1648
        %1661 = vmatpush.bf16.msra.mxu0 %v1647
        %1662 = vmatmul.bf16.gmra.mxu0 %v1652
        %v1663 = vpop.f32.mrf.mxu0
        %v1664 = vadd.f32 %v1637, %v1663
        %v1665 = vpop.f32.mrf.mxu0
        %v1666 = vadd.f32 %v1637, %v1665
        %1667 = vdwg.mxu0
        %v1668 = vmul.f32 %v1664, 0.5
        %v1669 = vmul.f32 %v1666, 0.5
        %v1670 = vmul.f32 %v1664, 0.044715
        %v1671 = vmul.f32 %v1666, 0.044715
        %v1672 = vmul.f32 %v1670, %v1664
        %v1673 = vmul.f32 %v1671, %v1666
        %v1674 = vmul.f32 %v1672, %v1664
        %v1675 = vmul.f32 %v1673, %v1666
        %v1676 = vadd.f32 %v1664, %v1674
        %v1677 = vadd.f32 %v1666, %v1675
        %v1678 = vmul.f32 %v1676, 0.7978846
        %v1679 = vmul.f32 %v1677, 0.7978846
        %v1680 = vtanh.pop %v1678
        %v1681 = vtanh.pop %v1679
        %v1682 = vadd.f32 %v1680, 1.0
        %v1683 = vadd.f32 %v1681, 1.0
        %v1684 = vmul.f32 %v1668, %v1682
        %v1685 = vmul.f32 %v1669, %v1683
        %v1686 = vpack.c.bf16 %v1685, %v1684
        %s1687 = scalar_lea.vmem %s9, 64
        %v1688 = vld [vmem:[%s1687] sm:$0xf]
        %v1689 = vld [vmem:[%s1687 + $0x4] sm:$0xf]
        %v1690 = vld [vmem:[%s1687 + $0x8] sm:$0xf]
        %v1691 = vld [vmem:[%s1687 + $0xc] sm:$0xf]
        %v1692 = vld [vmem:[%s1687 + $0x10] sm:$0xf]
        %v1693 = vld [vmem:[%s1687 + $0x14] sm:$0xf]
        %v1694 = vld [vmem:[%s1687 + $0x18] sm:$0xf]
        %v1695 = vld [vmem:[%s1687 + $0x1c] sm:$0xf]
        %v1696 = vld [vmem:[%s1687 + $0x20] sm:$0xf]
        %v1697 = vld [vmem:[%s1687 + $0x24] sm:$0xf]
        %v1698 = vld [vmem:[%s1687 + $0x28] sm:$0xf]
        %v1699 = vld [vmem:[%s1687 + $0x2c] sm:$0xf]
        %v1700 = vld [vmem:[%s1687 + $0x30] sm:$0xf]
        %v1701 = vld [vmem:[%s1687 + $0x34] sm:$0xf]
        %v1702 = vld [vmem:[%s1687 + $0x38] sm:$0xf]
        %v1703 = vld [vmem:[%s1687 + $0x3c] sm:$0xf]
        %v1704 = vperm.slane %v1114, 5
        %v1721 = vunpack.c.l.b16 %v1688
        %v1722 = vunpack.c.l.b16 %v1689
        %v1723 = vunpack.c.l.b16 %v1690
        %v1724 = vunpack.c.l.b16 %v1691
        %v1725 = vunpack.c.l.b16 %v1692
        %v1726 = vunpack.c.l.b16 %v1693
        %v1727 = vunpack.c.l.b16 %v1694
        %v1728 = vunpack.c.l.b16 %v1695
        %v1729 = vunpack.c.l.b16 %v1696
        %v1730 = vunpack.c.l.b16 %v1697
        %v1731 = vunpack.c.l.b16 %v1698
        %v1732 = vunpack.c.l.b16 %v1699
        %v1733 = vunpack.c.l.b16 %v1700
        %v1734 = vunpack.c.l.b16 %v1701
        %v1735 = vunpack.c.l.b16 %v1702
        %v1736 = vunpack.c.l.b16 %v1703
        %v1737 = vpack.c.b16 %v1722, %v1721
        %v1738 = vpack.c.b16 %v1724, %v1723
        %v1739 = vpack.c.b16 %v1726, %v1725
        %v1740 = vpack.c.b16 %v1728, %v1727
        %v1741 = vpack.c.b16 %v1730, %v1729
        %v1742 = vpack.c.b16 %v1732, %v1731
        %v1743 = vpack.c.b16 %v1734, %v1733
        %v1744 = vpack.c.b16 %v1736, %v1735
        %1753 = vmatpush.bf16.msra.mxu0 %v1744
        %1754 = vmatpush.bf16.msra.mxu0 %v1743
        %1755 = vmatpush.bf16.msra.mxu0 %v1742
        %1756 = vmatpush.bf16.msra.mxu0 %v1741
        %1757 = vmatpush.bf16.msra.mxu0 %v1740
        %1758 = vmatpush.bf16.msra.mxu0 %v1739
        %1759 = vmatpush.bf16.msra.mxu0 %v1738
        %1760 = vmatpush.bf16.msra.mxu0 %v1737
        %1761 = vmatmul.bf16.gmra.mxu0 %v1686
        %v1762 = vpop.f32.mrf.mxu0
        %v1763 = vpop.f32.mrf.mxu0
        %v1764 = vadd.f32 %v1704, %v1763
        %1765 = vdwg.mxu0
        %v1766 = vadd.f32 %v1577, %v1764
        %v1767 = vpack.c.bf16 %v1766, %v1766
        %v1768 = vld [vmem:[%s10] sm:$0xf]
        %v1769 = vld [vmem:[%s10 + $0x4] sm:$0xf]
        %v1770 = vld [vmem:[%s10 + $0x8] sm:$0xf]
        %v1771 = vld [vmem:[%s10 + $0xc] sm:$0xf]
        %v1772 = vld [vmem:[%s11] sm:$0x1]
        %v1777 = vunpack.c.l.b16 %v1768
        %v1778 = vunpack.c.l.b16 %v1769
        %v1779 = vunpack.c.l.b16 %v1770
        %v1780 = vunpack.c.l.b16 %v1771
        %v1781 = vpack.c.b16 %v1778, %v1777
        %v1782 = vpack.c.b16 %v1780, %v1779
        %v1786 = vsel %vm455, %v1767, 0
        %1788 = vmatpush.bf16.msra.mxu0 0
        %1789 = vmatpush.bf16.msra.mxu0 0
        %1790 = vmatpush.bf16.msra.mxu0 0
        %1791 = vmatpush.bf16.msra.mxu0 0
        %1792 = vmatpush.bf16.msra.mxu0 0
        %1793 = vmatpush.bf16.msra.mxu0 0
        %1794 = vmatpush.bf16.msra.mxu0 %v1782
        %1795 = vmatpush.bf16.msra.mxu0 %v1781
        %1796 = vmatmul.bf16.gmra.mxu0 %v1786
        %v1797 = vpop.f32.mrf.mxu0
        %v1798 = vadd.f32 %v1772, %v1797
        %v1799 = vpop.f32.mrf.mxu0
        %1800 = vdwg.mxu0
        %vm1801 = vcmask 24576
        %1802 = vst.msk [vmem:[%s406] sm:$0x1] %vm1801, %v1798
        %s1803 = sand.u32 %s291, 1
        %s1804 = scalar_lea.sflag [#allocation3], %s1803
        %s1805 = sand.u32 %s291, 1
        %s1806 = scalar_lea.vmem [#allocation2], %s1805
        // Predicated region
        $region69: #{dpt_forward.1} parent=67 // pred_check
          %p1807 = pneg %p301
        $region70: #{dpt_forward.1} parent=67 // pred_check_branch
          %1809 = sbr.rel (%p1807) target = $region72
        $region71: #{dpt_forward.1} parent=67 // pred_region
          %1811 = vsyncadd %s1804, 0
          %s1812 = scalar_lea.hbm %s12, %s26
          %s1814 = sshll.u32 %s1806, 4
          %s1815 = int_to_ptr.vmem [resolvable:$true] %s1814
          %s1816 = sshll.u32 %s1812, 4
          %s1817 = int_to_ptr.hbm [resolvable:$true] %s1816
          %1819 = dma.vmem_to_hbm [thread:$0]  %s1815, 16, %s1817, %s1804
        $region72: #{dpt_forward.1} parent=67 // pred_fallthru
          _
      $region68: #{dpt_forward.1} parent=5 // pred_fallthru
        _
      %p1820 = scmp.le.s32.totalorder 2, %s21
      // Predicated region
      $region73: #{dpt_forward.1} parent=5 // pred_check
        %p1821 = pneg %p1820
      $region74: #{dpt_forward.1} parent=5 // pred_check_branch
        %1823 = sbr.rel (%p1821) target = $region76
      $region75: #{dpt_forward.1} parent=5 // pred_region
        %s1824 = ssub.s32 %s21, 2
        // Predicated region
        $region77: #{dpt_forward.1} parent=75 // pred_check
          %p1825 = pneg %p307
        $region78: #{dpt_forward.1} parent=75 // pred_check_branch
          %1827 = sbr.rel (%p1825) target = $region80
        $region79: #{dpt_forward.1} parent=75 // pred_region
          %s1828 = sand.u32 %s292, 1
          %s1829 = scalar_lea.sflag [#allocation3], %s1828
          %s1830 = sand.u32 %s292, 1
          %s1831 = scalar_lea.vmem [#allocation2], %s1830
          %1833 = dma.done %s1829, 16
        $region80: #{dpt_forward.1} parent=75 // pred_fallthru
          _
      $region76: #{dpt_forward.1} parent=5 // pred_fallthru
        _
    $region6: #{dpt_forward.1} parent=1 // loop_footer
      %s25 = sadd.s32 1, %s21
    $region7: #{dpt_forward.1} parent=1 // loop_footer_branch
      %20 = sbr.rel target = $region3
    $region8: #{dpt_forward.1} parent=1 // loop_exit
      _
    %1834 = vsyncpa [#allocation3], 1
    %s1835 = scalar_lea.sflag [#allocation3], 1
    %1836 = vsyncpa %s1835, 1

</llo_original>
